<compile_context>
chip_gen: v5e
topology: v5e:2x2
jax: 0.10.0
libtpu: 0.0.40
codegen_flags: <defaults>
</compile_context>

<pallas_src>
import jax
import jax.numpy as jnp
from jax.experimental import pallas as pl
from jax.experimental.pallas import tpu as pltpu


# ----------------------------------------------------------------------------
# Kernels
# ----------------------------------------------------------------------------

def highway_kernel_resident(x_ref, w_ref, b_ref, o_ref):
    """Resident-weight path: w_ref is the full (2, D, D) bf16 weight in VMEM."""
    x = x_ref[...].astype(jnp.float32)          # residual path stays f32
    xb = x.astype(jnp.bfloat16)                 # bf16 into the MXU, f32 accumulate
    yh = jnp.dot(xb, w_ref[0], preferred_element_type=jnp.float32) + b_ref[0:1, :]
    yt = jnp.dot(xb, w_ref[1], preferred_element_type=jnp.float32) + b_ref[1:2, :]
    h = jnp.maximum(yh, 0.0)                    # ReLU(H branch) -> VPU
    # sigmoid(yt) = 1 / (1 + exp(-yt)); exp + approx reciprocal both run on the
    # EUP (separate VLIW slot), keeping the epilogue off the VALU.
    t = pl.reciprocal(1.0 + jnp.exp(-yt), approx=True)
    # Highway combine: h*t + x*(1-t) == x + t*(h - x)  (one fewer multiply)
    o_ref[...] = (x + t * (h - x)).astype(o_ref.dtype)


def highway_kernel_ntiled(x_ref, w_ref, b_ref, o_ref):
    """Output-feature-tiled path for large D.

    Grid = (D // tn, B // tm) with the N axis OUTER, so the (2, D, tn) weight
    block is fetched from HBM once per call while x row blocks cycle under it.
      x_ref: (tm, D)   w_ref: (2, D, tn)   b_ref: (2, tn)   o_ref: (tm, tn)
    """
    j = pl.program_id(0)                        # output-feature tile index
    tn = o_ref.shape[-1]
    xb = x_ref[...].astype(jnp.bfloat16)        # full row block for the K contraction
    yh = jnp.dot(xb, w_ref[0], preferred_element_type=jnp.float32) + b_ref[0:1, :]
    yt = jnp.dot(xb, w_ref[1], preferred_element_type=jnp.float32) + b_ref[1:2, :]
    h = jnp.maximum(yh, 0.0)
    t = pl.reciprocal(1.0 + jnp.exp(-yt), approx=True)
    # Residual slice of x matching this output-feature tile (lane-aligned).
    start = pl.multiple_of(j * tn, 128)
    x_res = x_ref[:, pl.ds(start, tn)].astype(jnp.float32)
    o_ref[...] = (x_res + t * (h - x_res)).astype(o_ref.dtype)


# ----------------------------------------------------------------------------
# Parameter preparation (one-time; do NOT call per forward pass)
# ----------------------------------------------------------------------------

def prepare_highway_params(w_h, b_h, w_t, b_t):
    """PyTorch Linear weights are (out, in); transpose once so the kernel does
    x @ W^T, stack H/T along a leading axis of size 2 (each branch is then a
    contiguous, well-tiled (D, tn) slab), and cast weights to bf16 for the MXU.
    """
    w_cat = jnp.stack([w_h.T, w_t.T], axis=0).astype(jnp.bfloat16)   # (2, D, D)
    b_cat = jnp.stack([b_h, b_t], axis=0).astype(jnp.float32)        # (2, D)
    return w_cat, b_cat


# ----------------------------------------------------------------------------
# Tiling heuristics (generation-aware)
# ----------------------------------------------------------------------------

_TM_CANDS = (2048, 1024, 512, 256, 128, 64, 32, 16, 8)
_TN_CANDS = (2048, 1024, 512, 256, 128)


def _chip_profile():
    """Per-TensorCore VMEM capacity and number of TensorCores sharing the grid."""
    kind = ""
    try:
        kind = jax.devices()[0].device_kind.lower()
    except Exception:
        pass
    if "v7" in kind:
        # v7x: 64 MiB VMEM per TC, two TCs shard the "parallel" grid axes.
        return {"vmem_bytes": 64 << 20, "num_tc": 2}
    # v5e / v6e (and older): 128 MiB VMEM, single TensorCore per chip.
    return {"vmem_bytes": 128 << 20, "num_tc": 1}


def _divisor_cands(total, cands):
    out = [c for c in cands if c <= total and total % c == 0]
    return out if out else [total]


def _resident_need(tm, D, x_it, o_it, weight_bytes, bias_bytes):
    return (weight_bytes + bias_bytes
            + 2 * tm * D * x_it          # double-buffered x tiles
            + 2 * tm * D * o_it          # double-buffered out tiles
            + tm * D * 2                 # bf16 copy of x for the MXU
            + 4 * tm * D * 4             # f32 gate intermediates (yh, yt, h, t)
            + (2 << 20))                 # headroom


def _ntiled_need(tm, tn, D, x_it, o_it):
    w_tile = 2 * D * tn * 2              # (2, D, tn) bf16
    b_tile = 2 * tn * 4
    return (2 * w_tile + 2 * b_tile      # double-buffered weight / bias tiles
            + 2 * tm * D * x_it
            + 2 * tm * tn * o_it
            + tm * D * 2
            + 4 * tm * tn * 4
            + (2 << 20))


def _pick_tm_resident(B, D, x_it, o_it, weight_bytes, bias_bytes, num_tc, vmem_budget):
    cands = _divisor_cands(B, _TM_CANDS)
    fitting = [tm for tm in cands
               if _resident_need(tm, D, x_it, o_it, weight_bytes, bias_bytes) <= vmem_budget]
    if not fitting:
        return None
    if num_tc > 1:
        # v7x: prefer an even (>= num_tc) step count so both TCs get equal work.
        for tm in fitting:
            steps = B // tm
            if steps >= num_tc and steps % num_tc == 0:
                return tm
    # Single TC (v5e/v6e) or no balanced option: take the largest tile that fits.
    return fitting[0]


def _pick_tiles_ntiled(B, D, x_it, o_it, vmem_budget, tm_forced=None, tn_forced=None):
    tm_cands = [tm_forced] if tm_forced else _divisor_cands(B, _TM_CANDS)
    tn_cands = [tn_forced] if tn_forced else _divisor_cands(D, _TN_CANDS)
    for tm in tm_cands:
        for tn in tn_cands:
            if _ntiled_need(tm, tn, D, x_it, o_it) <= vmem_budget:
                return tm, tn
    return tm_cands[-1], tn_cands[-1]


# ----------------------------------------------------------------------------
# Forward wrapper
# ----------------------------------------------------------------------------

def highway_forward(x, w_cat, b_cat, *, tm=None, tn=None):
    """x: (B, D) f32 or bf16. w_cat: (2, D, D) bf16. b_cat: (2, D) f32.

    Output dtype matches x. Passing bf16 activations halves the HBM-bound
    x/out traffic; the in-kernel residual math stays in f32 either way.
    """
    B, D = x.shape
    assert D % 128 == 0, "in_features must be a multiple of 128 (lane alignment)"
    assert w_cat.shape == (2, D, D), "use prepare_highway_params()"
    assert b_cat.shape == (2, D), "use prepare_highway_params()"

    prof = _chip_profile()
    num_tc = prof["num_tc"]
    vmem_budget = prof["vmem_bytes"] - (8 << 20)   # leave compiler headroom
    x_it = x.dtype.itemsize
    o_it = x.dtype.itemsize
    weight_bytes = w_cat.size * w_cat.dtype.itemsize
    bias_bytes = b_cat.size * b_cat.dtype.itemsize

    flops = 4 * B * D * D            # two (B,D)x(D,D) MXU matmuls
    transcendentals = 2 * B * D      # exp + reciprocal per gate element

    # Path selection: keep the weight resident in VMEM while it comfortably
    # fits; otherwise tile the output-feature axis.
    resident_cap = vmem_budget // 2
    use_ntiled = (tn is not None and tn < D) or (weight_bytes > resident_cap)

    if not use_ntiled:
        tm_sel = tm if tm is not None else _pick_tm_resident(
            B, D, x_it, o_it, weight_bytes, bias_bytes, num_tc, vmem_budget)
        if tm_sel is None:
            use_ntiled = True

    if not use_ntiled:
        assert B % tm_sel == 0
        grid = (B // tm_sel,)
        need = _resident_need(tm_sel, D, x_it, o_it, weight_bytes, bias_bytes)
        vmem_limit = int(min(vmem_budget, max(2 * need, 32 << 20)))
        bytes_accessed = x.size * x_it + weight_bytes + bias_bytes + B * D * o_it
        return pl.pallas_call(
            highway_kernel_resident,
            out_shape=jax.ShapeDtypeStruct((B, D), x.dtype),
            grid_spec=pltpu.PrefetchScalarGridSpec(
                num_scalar_prefetch=0,
                grid=grid,
                in_specs=[
                    pl.BlockSpec((tm_sel, D), lambda i: (i, 0)),             # x tile (pipelined)
                    pl.BlockSpec(memory_space=pltpu.MemorySpace.VMEM),       # fused W, resident
                    pl.BlockSpec(memory_space=pltpu.MemorySpace.VMEM),       # fused bias, resident
                ],
                out_specs=pl.BlockSpec((tm_sel, D), lambda i: (i, 0)),
            ),
            compiler_params=pltpu.CompilerParams(
                dimension_semantics=("parallel",),
                vmem_limit_bytes=vmem_limit,
            ),
            cost_estimate=pl.CostEstimate(
                flops=flops, transcendentals=transcendentals,
                bytes_accessed=bytes_accessed),
        )(x, w_cat, b_cat)

    # ---- Output-feature-tiled path (weight too large to keep resident) ----
    tm_sel, tn_sel = _pick_tiles_ntiled(B, D, x_it, o_it, vmem_budget,
                                        tm_forced=tm, tn_forced=tn)
    assert B % tm_sel == 0 and D % tn_sel == 0
    # N axis OUTER: the weight tile stays put across the inner batch sweep, so
    # the full weight is read from HBM exactly once per call.
    grid = (D // tn_sel, B // tm_sel)
    need = _ntiled_need(tm_sel, tn_sel, D, x_it, o_it)
    vmem_limit = int(min(vmem_budget, max(2 * need, 32 << 20)))
    bytes_accessed = (x.size * x_it * (D // tn_sel)   # x re-read once per N tile
                      + weight_bytes + bias_bytes + B * D * o_it)
    return pl.pallas_call(
        highway_kernel_ntiled,
        out_shape=jax.ShapeDtypeStruct((B, D), x.dtype),
        grid_spec=pltpu.PrefetchScalarGridSpec(
            num_scalar_prefetch=0,
            grid=grid,
            in_specs=[
                pl.BlockSpec((tm_sel, D), lambda j, i: (i, 0)),          # x row block
                pl.BlockSpec((2, D, tn_sel), lambda j, i: (0, 0, j)),    # weight column block
                pl.BlockSpec((2, tn_sel), lambda j, i: (0, j)),          # bias column block
            ],
            out_specs=pl.BlockSpec((tm_sel, tn_sel), lambda j, i: (i, j)),
        ),
        compiler_params=pltpu.CompilerParams(
            dimension_semantics=("parallel", "parallel"),
            vmem_limit_bytes=vmem_limit,
        ),
        cost_estimate=pl.CostEstimate(
            flops=flops, transcendentals=transcendentals,
            bytes_accessed=bytes_accessed),
    )(x, w_cat, b_cat)


# ----------------------------------------------------------------------------
# References
# ----------------------------------------------------------------------------

def highway_reference_f32(x, w_h, b_h, w_t, b_t):
    h = jnp.maximum(x @ w_h.T + b_h, 0.0)
    t = jax.nn.sigmoid(x @ w_t.T + b_t)
    return h * t + x * (1.0 - t)


def highway_reference_bf16(x, w_h, b_h, w_t, b_t):
    # Mirrors the kernel's numerics: bf16 MXU operands, f32 accumulate/epilogue.
    xb = x.astype(jnp.bfloat16)
    h = jnp.maximum(
        jnp.dot(xb, w_h.T.astype(jnp.bfloat16), preferred_element_type=jnp.float32) + b_h, 0.0)
    t = jax.nn.sigmoid(
        jnp.dot(xb, w_t.T.astype(jnp.bfloat16), preferred_element_type=jnp.float32) + b_t)
    x32 = x.astype(jnp.float32)
    return x32 + t * (h - x32)


# ----------------------------------------------------------------------------
# Self-test
# ----------------------------------------------------------------------------

if __name__ == "__main__":
    B, D = 256, 256  # batch (tokens), in_features
    key = jax.random.PRNGKey(0)
    kx, k1, k2, k3, k4 = jax.random.split(key, 5)

    # Deterministic synthetic parameters (PyTorch Linear: weight (out,in), bias (out,)).
    bound = 1.0 / (D ** 0.5)
    x = jax.random.normal(kx, (B, D), dtype=jnp.float32)
    w_h = jax.random.uniform(k1, (D, D), jnp.float32, -bound, bound)
    b_h = jax.random.uniform(k2, (D,), jnp.float32, -bound, bound)
    w_t = jax.random.uniform(k3, (D, D), jnp.float32, -bound, bound)
    b_t = jax.random.uniform(k4, (D,), jnp.float32, -bound, bound)

    # One-time parameter preparation (transpose + stack + bf16 cast).
    w_cat, b_cat = prepare_highway_params(w_h, b_h, w_t, b_t)

    ref_bf16 = highway_reference_bf16(x, w_h, b_h, w_t, b_t)
    ref_f32 = highway_reference_f32(x, w_h, b_h, w_t, b_t)

    # Path A: resident fused weight, batch-only grid (auto tile selection).
    out_a = jax.block_until_ready(highway_forward(x, w_cat, b_cat))
    assert out_a.shape == (B, D)
    assert jnp.allclose(out_a, ref_bf16, atol=1e-2, rtol=1e-2), \
        "resident path: mismatch vs bf16-consistent reference"
    assert jnp.allclose(out_a, ref_f32, atol=3e-2, rtol=3e-2), \
        "resident path: mismatch vs f32 reference"

    # Path B: output-feature-tiled weight (exercised at small D by forcing tn).
    out_b = jax.block_until_ready(highway_forward(x, w_cat, b_cat, tn=128))
    assert jnp.allclose(out_b, ref_bf16, atol=1e-2, rtol=1e-2), \
        "n-tiled path: mismatch vs bf16-consistent reference"
    assert jnp.allclose(out_b, ref_f32, atol=3e-2, rtol=3e-2), \
        "n-tiled path: mismatch vs f32 reference"

    # bf16 activation path (halves x/out HBM traffic in the mem-bound regime).
    out_c = jax.block_until_ready(
        highway_forward(x.astype(jnp.bfloat16), w_cat, b_cat))
    assert out_c.dtype == jnp.bfloat16
    assert jnp.allclose(out_c.astype(jnp.float32), ref_f32, atol=6e-2, rtol=6e-2), \
        "bf16 activation path: mismatch vs f32 reference"

    print("KERNEL_OK")
</pallas_src>

<mosaic_0001>
module attributes {stable_mosaic.version = 11 : i64} {
  func.func @highway_kernel_resident(%arg0: i32, %arg1: memref<256x256xf32, #tpu.memory_space<vmem>>, %arg2: memref<2x256x256xbf16, #tpu.memory_space<vmem>>, %arg3: memref<2x256xf32, #tpu.memory_space<vmem>>, %arg4: memref<256x256xf32, #tpu.memory_space<vmem>>) attributes {dimension_semantics = [#tpu.dimension_semantics<parallel>], iteration_bounds = array<i64: 1>, scalar_prefetch = 0 : i64, scratch_operands = 0 : i64, tpu.core_type = #tpu.core_type<tc>, window_params = [{transform_indices = @transform_0, window_bounds = array<i64: 256, 256>}, {pipeline_mode = #tpu.pipeline_mode<synchronous>, transform_indices = @transform_1, window_bounds = array<i64: 2, 256, 256>}, {pipeline_mode = #tpu.pipeline_mode<synchronous>, transform_indices = @transform_2, window_bounds = array<i64: 2, 256>}, {transform_indices = @transform_3, window_bounds = array<i64: 256, 256>}]} {
    %c0 = arith.constant 0 : index
    %c0_0 = arith.constant 0 : index
    %0 = vector.load %arg1[%c0, %c0_0] : memref<256x256xf32, #tpu.memory_space<vmem>>, vector<256x256xf32>
    %1 = arith.truncf %0 : vector<256x256xf32> to vector<256x256xbf16>
    %c0_1 = arith.constant 0 : index
    %c0_2 = arith.constant 0 : index
    %c0_3 = arith.constant 0 : index
    %2 = vector.load %arg2[%c0_1, %c0_2, %c0_3] : memref<2x256x256xbf16, #tpu.memory_space<vmem>>, vector<1x256x256xbf16>
    %3 = vector.shape_cast %2 : vector<1x256x256xbf16> to vector<256x256xbf16>
    %cst = arith.constant dense<0.000000e+00> : vector<256x256xf32>
    %4 = tpu.matmul %1, %3, %cst {dimension_numbers = #tpu.dot_dimension_numbers<[1], [0], [0], [1], [0, 0, 1, 1], [], []>} : vector<256x256xbf16>, vector<256x256xbf16>, vector<256x256xf32> -> vector<256x256xf32>
    %c0_4 = arith.constant 0 : index
    %c0_5 = arith.constant 0 : index
    %5 = vector.load %arg3[%c0_4, %c0_5] : memref<2x256xf32, #tpu.memory_space<vmem>>, vector<1x256xf32>
    %6 = vector.broadcast %5 : vector<1x256xf32> to vector<256x256xf32>
    %7 = arith.addf %4, %6 : vector<256x256xf32>
    %c1 = arith.constant 1 : index
    %c0_6 = arith.constant 0 : index
    %c0_7 = arith.constant 0 : index
    %8 = vector.load %arg2[%c1, %c0_6, %c0_7] : memref<2x256x256xbf16, #tpu.memory_space<vmem>>, vector<1x256x256xbf16>
    %9 = vector.shape_cast %8 : vector<1x256x256xbf16> to vector<256x256xbf16>
    %cst_8 = arith.constant dense<0.000000e+00> : vector<256x256xf32>
    %10 = tpu.matmul %1, %9, %cst_8 {dimension_numbers = #tpu.dot_dimension_numbers<[1], [0], [0], [1], [0, 0, 1, 1], [], []>} : vector<256x256xbf16>, vector<256x256xbf16>, vector<256x256xf32> -> vector<256x256xf32>
    %c1_9 = arith.constant 1 : index
    %c0_10 = arith.constant 0 : index
    %11 = vector.load %arg3[%c1_9, %c0_10] : memref<2x256xf32, #tpu.memory_space<vmem>>, vector<1x256xf32>
    %12 = vector.broadcast %11 : vector<1x256xf32> to vector<256x256xf32>
    %13 = arith.addf %10, %12 : vector<256x256xf32>
    %cst_11 = arith.constant 0.000000e+00 : f32
    %14 = vector.broadcast %cst_11 : f32 to vector<256x256xf32>
    %15 = arith.maximumf %7, %14 : vector<256x256xf32>
    %cst_12 = arith.constant 0.000000e+00 : f32
    %16 = vector.broadcast %cst_12 : f32 to vector<256x256xf32>
    %17 = arith.subf %16, %13 : vector<256x256xf32>
    %18 = math.exp %17 : vector<256x256xf32>
    %cst_13 = arith.constant 1.000000e+00 : f32
    %19 = vector.broadcast %cst_13 : f32 to vector<256x256xf32>
    %20 = arith.addf %19, %18 : vector<256x256xf32>
    %21 = tpu.reciprocal %20 {approx = true} : vector<256x256xf32> -> vector<256x256xf32>
    %22 = arith.subf %15, %0 : vector<256x256xf32>
    %23 = arith.mulf %21, %22 : vector<256x256xf32>
    %24 = arith.addf %0, %23 : vector<256x256xf32>
    %c0_14 = arith.constant 0 : index
    %c0_15 = arith.constant 0 : index
    %25 = vector.load %arg4[%c0_14, %c0_15] : memref<256x256xf32, #tpu.memory_space<vmem>>, vector<256x256xf32>
    tpu.vector_store %arg4[%c0_14, %c0_15], %24 {strides = array<i32>} : memref<256x256xf32, #tpu.memory_space<vmem>>, vector<256x256xf32>,
    return
  }
  func.func @transform_0(%arg0: i32) -> (i32, i32) {
    %c0_i32 = arith.constant 0 : i32
    %c0_i32_0 = arith.constant 0 : i32
    return %arg0, %c0_i32 : i32, i32
  }
  func.func @transform_1(%arg0: i32) -> (i32, i32, i32) {
    %c0_i32 = arith.constant 0 : i32
    %c0_i32_0 = arith.constant 0 : i32
    %c0_i32_1 = arith.constant 0 : i32
    %c0_i32_2 = arith.constant 0 : i32
    return %c0_i32, %c0_i32_0, %c0_i32_1 : i32, i32, i32
  }
  func.func @transform_2(%arg0: i32) -> (i32, i32) {
    %c0_i32 = arith.constant 0 : i32
    %c0_i32_0 = arith.constant 0 : i32
    %c0_i32_1 = arith.constant 0 : i32
    return %c0_i32, %c0_i32_0 : i32, i32
  }
  func.func @transform_3(%arg0: i32) -> (i32, i32) {
    %c0_i32 = arith.constant 0 : i32
    %c0_i32_0 = arith.constant 0 : i32
    return %arg0, %c0_i32 : i32, i32
  }
}

</mosaic_0001>

<llo_original>
// kernel: tpu_custom_call.1
$region0: #{tpu_custom_call.1}
  #allocation0 [shape = 'u32[]', space=smem, size = 0x4, offset = 0x4, fixed_abs, tag = 'smem constant byte address 0x4 - core index']
  #allocation1 [shape = 'u32[72,128]{1,0:T(1,128)}', space=vmem, size = 0x9000, scoped, tag = 'internal scratch']
  %s0 = inlined_call_operand.hbm [shape: f32[256,256], index: 0, kind: input, shape index: {}]
  %s1 = inlined_call_operand.hbm [shape: bf16[2,256,256], index: 1, kind: input, shape index: {}]
  %s2 = inlined_call_operand.hbm [shape: f32[2,256], index: 2, kind: input, shape index: {}]
  %s3 = inlined_call_operand.hbm [shape: f32[256,256], index: 3, kind: output, shape index: {}]
  %s4 = sld [smem:[#allocation0]]
  $region34: #{tpu_custom_call.1} parent=0
    _
  %s6 = ssub.s32 1, %s4
  %s7 = scalar_select 0, %s6, %s4
  $region1: #{tpu_custom_call.1} parent=0
    #allocation2 [shape = 'u8[262144]{0}', space=vmem, size = 0x40000, scoped, tag = 'input window, operand 0, single buffered']
    #allocation3 [shape = 's32[1]{0}', space=sflag, size = 0x4, scoped, tag = 'scoped memory for tpu_custom_call.1']
    #allocation4 [shape = 's32[1]{0}', space=sflag, size = 0x4, scoped, tag = 'scoped memory for tpu_custom_call.1']
    #allocation5 [shape = 'u8[262144]{0}', space=vmem, size = 0x40000, scoped, tag = 'input window, operand 1, single buffered']
    #allocation6 [shape = 's32[1]{0}', space=sflag, size = 0x4, scoped, tag = 'scoped memory for tpu_custom_call.1']
    #allocation7 [shape = 'u8[2048]{0}', space=vmem, size = 0x800, scoped, tag = 'input window, operand 2, single buffered']
    #allocation8 [shape = 'u8[262144]{0}', space=vmem, size = 0x40000, scoped, tag = 'output window, operand 0, single buffered']
    %8 = vsyncpa [#allocation3], 0
    %9 = vsyncpa [#allocation6], 0
    %10 = vsyncpa [#allocation4], 0
    // Predicated region
    $region2: #{tpu_custom_call.1} parent=1 // pred_check
      _
    $region3: #{tpu_custom_call.1} parent=1 // pred_check_branch
      %12 = sbr.rel (0) target = $region5
    $region4: #{tpu_custom_call.1} parent=1 // pred_region
      %14 = vsyncadd [#allocation3], 0
      %s15 = sshll.u32 %s0, 4
      %s16 = int_to_ptr.hbm [resolvable:$true] %s15
      %s17 = sshll.u32 [#allocation2], 4
      %s18 = int_to_ptr.vmem [resolvable:$true] %s17
      %23 = dma.hbm_to_vmem [thread:$0]  %s16, 8192, %s18, [#allocation3], 256, 256, 16
    $region5: #{tpu_custom_call.1} parent=1 // pred_fallthru
      _
    // Predicated region
    $region6: #{tpu_custom_call.1} parent=1 // pred_check
      _
    $region7: #{tpu_custom_call.1} parent=1 // pred_check_branch
      %25 = sbr.rel (0) target = $region9
    $region8: #{tpu_custom_call.1} parent=1 // pred_region
      %27 = vsyncadd [#allocation6], 0
      %s28 = sshll.u32 %s1, 4
      %s29 = int_to_ptr.hbm [resolvable:$true] %s28
      %s30 = sshll.u32 [#allocation5], 4
      %s31 = int_to_ptr.vmem [resolvable:$true] %s30
      %36 = dma.hbm_to_vmem [thread:$0]  %s29, 8192, %s31, [#allocation6], 128, 128, 8
    $region9: #{tpu_custom_call.1} parent=1 // pred_fallthru
      _
    // Predicated region
    $region10: #{tpu_custom_call.1} parent=1 // pred_check
      _
    $region11: #{tpu_custom_call.1} parent=1 // pred_check_branch
      %38 = sbr.rel (0) target = $region13
    $region12: #{tpu_custom_call.1} parent=1 // pred_region
      %40 = vsyncadd [#allocation6], 0
      %s42 = sshll.u32 %s2, 4
      %s43 = int_to_ptr.hbm [resolvable:$true] %s42
      %s44 = sshll.u32 [#allocation7], 4
      %s45 = int_to_ptr.vmem [resolvable:$true] %s44
      %47 = dma.hbm_to_vmem [thread:$0]  %s43, 64, %s45, [#allocation6]
    $region13: #{tpu_custom_call.1} parent=1 // pred_fallthru
      _
    // Predicated region
    $region14: #{tpu_custom_call.1} parent=1 // pred_check
      _
    $region15: #{tpu_custom_call.1} parent=1 // pred_check_branch
      %49 = sbr.rel (0) target = $region17
    $region16: #{tpu_custom_call.1} parent=1 // pred_region
      %51 = dma.done [#allocation3], 8192
    $region17: #{tpu_custom_call.1} parent=1 // pred_fallthru
      _
    // Predicated region
    $region18: #{tpu_custom_call.1} parent=1 // pred_check
      _
    $region19: #{tpu_custom_call.1} parent=1 // pred_check_branch
      %53 = sbr.rel (0) target = $region21
    $region20: #{tpu_custom_call.1} parent=1 // pred_region
      %55 = dma.done [#allocation6], 8192
    $region21: #{tpu_custom_call.1} parent=1 // pred_fallthru
      _
    // Predicated region
    $region22: #{tpu_custom_call.1} parent=1 // pred_check
      _
    $region23: #{tpu_custom_call.1} parent=1 // pred_check_branch
      %57 = sbr.rel (0) target = $region25
    $region24: #{tpu_custom_call.1} parent=1 // pred_region
      %59 = dma.done [#allocation6], 64
    $region25: #{tpu_custom_call.1} parent=1 // pred_fallthru
      _
    %v60 = vld [vmem:[#allocation2] sm:$0xff]
    %v61 = vld [vmem:[#allocation2 + $0x8] sm:$0xff]
    %v62 = vld [vmem:[#allocation2 + $0x10] sm:$0xff]
    %v63 = vld [vmem:[#allocation2 + $0x18] sm:$0xff]
    %v64 = vld [vmem:[#allocation2 + $0x20] sm:$0xff]
    %v65 = vld [vmem:[#allocation2 + $0x28] sm:$0xff]
    %v66 = vld [vmem:[#allocation2 + $0x30] sm:$0xff]
    %v67 = vld [vmem:[#allocation2 + $0x38] sm:$0xff]
    %v68 = vld [vmem:[#allocation2 + $0x40] sm:$0xff]
    %v69 = vld [vmem:[#allocation2 + $0x48] sm:$0xff]
    %v70 = vld [vmem:[#allocation2 + $0x50] sm:$0xff]
    %v71 = vld [vmem:[#allocation2 + $0x58] sm:$0xff]
    %v72 = vld [vmem:[#allocation2 + $0x60] sm:$0xff]
    %v73 = vld [vmem:[#allocation2 + $0x68] sm:$0xff]
    %v74 = vld [vmem:[#allocation2 + $0x70] sm:$0xff]
    %v75 = vld [vmem:[#allocation2 + $0x78] sm:$0xff]
    %v76 = vld [vmem:[#allocation2 + $0x80] sm:$0xff]
    %v77 = vld [vmem:[#allocation2 + $0x88] sm:$0xff]
    %v78 = vld [vmem:[#allocation2 + $0x90] sm:$0xff]
    %v79 = vld [vmem:[#allocation2 + $0x98] sm:$0xff]
    %v80 = vld [vmem:[#allocation2 + $0xa0] sm:$0xff]
    %v81 = vld [vmem:[#allocation2 + $0xa8] sm:$0xff]
    %v82 = vld [vmem:[#allocation2 + $0xb0] sm:$0xff]
    %v83 = vld [vmem:[#allocation2 + $0xb8] sm:$0xff]
    %v84 = vld [vmem:[#allocation2 + $0xc0] sm:$0xff]
    %v85 = vld [vmem:[#allocation2 + $0xc8] sm:$0xff]
    %v86 = vld [vmem:[#allocation2 + $0xd0] sm:$0xff]
    %v87 = vld [vmem:[#allocation2 + $0xd8] sm:$0xff]
    %v88 = vld [vmem:[#allocation2 + $0xe0] sm:$0xff]
    %v89 = vld [vmem:[#allocation2 + $0xe8] sm:$0xff]
    %v90 = vld [vmem:[#allocation2 + $0xf0] sm:$0xff]
    %v91 = vld [vmem:[#allocation2 + $0xf8] sm:$0xff]
    %v92 = vld [vmem:[#allocation2 + $0x100] sm:$0xff]
    %v93 = vld [vmem:[#allocation2 + $0x108] sm:$0xff]
    %v94 = vld [vmem:[#allocation2 + $0x110] sm:$0xff]
    %v95 = vld [vmem:[#allocation2 + $0x118] sm:$0xff]
    %v96 = vld [vmem:[#allocation2 + $0x120] sm:$0xff]
    %v97 = vld [vmem:[#allocation2 + $0x128] sm:$0xff]
    %v98 = vld [vmem:[#allocation2 + $0x130] sm:$0xff]
    %v99 = vld [vmem:[#allocation2 + $0x138] sm:$0xff]
    %v100 = vld [vmem:[#allocation2 + $0x140] sm:$0xff]
    %v101 = vld [vmem:[#allocation2 + $0x148] sm:$0xff]
    %v102 = vld [vmem:[#allocation2 + $0x150] sm:$0xff]
    %v103 = vld [vmem:[#allocation2 + $0x158] sm:$0xff]
    %v104 = vld [vmem:[#allocation2 + $0x160] sm:$0xff]
    %v105 = vld [vmem:[#allocation2 + $0x168] sm:$0xff]
    %v106 = vld [vmem:[#allocation2 + $0x170] sm:$0xff]
    %v107 = vld [vmem:[#allocation2 + $0x178] sm:$0xff]
    %v108 = vld [vmem:[#allocation2 + $0x180] sm:$0xff]
    %v109 = vld [vmem:[#allocation2 + $0x188] sm:$0xff]
    %v110 = vld [vmem:[#allocation2 + $0x190] sm:$0xff]
    %v111 = vld [vmem:[#allocation2 + $0x198] sm:$0xff]
    %v112 = vld [vmem:[#allocation2 + $0x1a0] sm:$0xff]
    %v113 = vld [vmem:[#allocation2 + $0x1a8] sm:$0xff]
    %v114 = vld [vmem:[#allocation2 + $0x1b0] sm:$0xff]
    %v115 = vld [vmem:[#allocation2 + $0x1b8] sm:$0xff]
    %v116 = vld [vmem:[#allocation2 + $0x1c0] sm:$0xff]
    %v117 = vld [vmem:[#allocation2 + $0x1c8] sm:$0xff]
    %v118 = vld [vmem:[#allocation2 + $0x1d0] sm:$0xff]
    %v119 = vld [vmem:[#allocation2 + $0x1d8] sm:$0xff]
    %v120 = vld [vmem:[#allocation2 + $0x1e0] sm:$0xff]
    %v121 = vld [vmem:[#allocation2 + $0x1e8] sm:$0xff]
    %v122 = vld [vmem:[#allocation2 + $0x1f0] sm:$0xff]
    %v123 = vld [vmem:[#allocation2 + $0x1f8] sm:$0xff]
    %v124 = vpack.c.bf16 %v62, %v60
    %v125 = vpack.c.bf16 %v63, %v61
    %v126 = vpack.c.bf16 %v66, %v64
    %v127 = vpack.c.bf16 %v67, %v65
    %v128 = vpack.c.bf16 %v70, %v68
    %v129 = vpack.c.bf16 %v71, %v69
    %v130 = vpack.c.bf16 %v74, %v72
    %v131 = vpack.c.bf16 %v75, %v73
    %v132 = vpack.c.bf16 %v78, %v76
    %v133 = vpack.c.bf16 %v79, %v77
    %v134 = vpack.c.bf16 %v82, %v80
    %v135 = vpack.c.bf16 %v83, %v81
    %v136 = vpack.c.bf16 %v86, %v84
    %v137 = vpack.c.bf16 %v87, %v85
    %v138 = vpack.c.bf16 %v90, %v88
    %v139 = vpack.c.bf16 %v91, %v89
    %v140 = vpack.c.bf16 %v94, %v92
    %v141 = vpack.c.bf16 %v95, %v93
    %v142 = vpack.c.bf16 %v98, %v96
    %v143 = vpack.c.bf16 %v99, %v97
    %v144 = vpack.c.bf16 %v102, %v100
    %v145 = vpack.c.bf16 %v103, %v101
    %v146 = vpack.c.bf16 %v106, %v104
    %v147 = vpack.c.bf16 %v107, %v105
    %v148 = vpack.c.bf16 %v110, %v108
    %v149 = vpack.c.bf16 %v111, %v109
    %v150 = vpack.c.bf16 %v114, %v112
    %v151 = vpack.c.bf16 %v115, %v113
    %v152 = vpack.c.bf16 %v118, %v116
    %v153 = vpack.c.bf16 %v119, %v117
    %v154 = vpack.c.bf16 %v122, %v120
    %v155 = vpack.c.bf16 %v123, %v121
    %v156 = vld [vmem:[#allocation5] sm:$0xff]
    %v157 = vld [vmem:[#allocation5 + $0x8] sm:$0xff]
    %v158 = vld [vmem:[#allocation5 + $0x10] sm:$0xff]
    %v159 = vld [vmem:[#allocation5 + $0x18] sm:$0xff]
    %v160 = vld [vmem:[#allocation5 + $0x20] sm:$0xff]
    %v161 = vld [vmem:[#allocation5 + $0x28] sm:$0xff]
    %v162 = vld [vmem:[#allocation5 + $0x30] sm:$0xff]
    %v163 = vld [vmem:[#allocation5 + $0x38] sm:$0xff]
    %v164 = vld [vmem:[#allocation5 + $0x40] sm:$0xff]
    %v165 = vld [vmem:[#allocation5 + $0x48] sm:$0xff]
    %v166 = vld [vmem:[#allocation5 + $0x50] sm:$0xff]
    %v167 = vld [vmem:[#allocation5 + $0x58] sm:$0xff]
    %v168 = vld [vmem:[#allocation5 + $0x60] sm:$0xff]
    %v169 = vld [vmem:[#allocation5 + $0x68] sm:$0xff]
    %v170 = vld [vmem:[#allocation5 + $0x70] sm:$0xff]
    %v171 = vld [vmem:[#allocation5 + $0x78] sm:$0xff]
    %v172 = vld [vmem:[#allocation5 + $0x80] sm:$0xff]
    %v173 = vld [vmem:[#allocation5 + $0x88] sm:$0xff]
    %v174 = vld [vmem:[#allocation5 + $0x90] sm:$0xff]
    %v175 = vld [vmem:[#allocation5 + $0x98] sm:$0xff]
    %v176 = vld [vmem:[#allocation5 + $0xa0] sm:$0xff]
    %v177 = vld [vmem:[#allocation5 + $0xa8] sm:$0xff]
    %v178 = vld [vmem:[#allocation5 + $0xb0] sm:$0xff]
    %v179 = vld [vmem:[#allocation5 + $0xb8] sm:$0xff]
    %v180 = vld [vmem:[#allocation5 + $0xc0] sm:$0xff]
    %v181 = vld [vmem:[#allocation5 + $0xc8] sm:$0xff]
    %v182 = vld [vmem:[#allocation5 + $0xd0] sm:$0xff]
    %v183 = vld [vmem:[#allocation5 + $0xd8] sm:$0xff]
    %v184 = vld [vmem:[#allocation5 + $0xe0] sm:$0xff]
    %v185 = vld [vmem:[#allocation5 + $0xe8] sm:$0xff]
    %v186 = vld [vmem:[#allocation5 + $0xf0] sm:$0xff]
    %v187 = vld [vmem:[#allocation5 + $0xf8] sm:$0xff]
    %v188 = vld [vmem:[#allocation7] ss:$2 sm:$0x3]
    %v190 = vperm.slane %v188, 0
    %v191 = vperm.slane %v188, 1
    %v226 = vunpack.c.l.b16 %v156
    %v227 = vunpack.c.h.b16 %v156
    %v228 = vunpack.c.l.b16 %v157
    %v229 = vunpack.c.h.b16 %v157
    %v230 = vunpack.c.l.b16 %v158
    %v231 = vunpack.c.h.b16 %v158
    %v232 = vunpack.c.l.b16 %v159
    %v233 = vunpack.c.h.b16 %v159
    %v234 = vunpack.c.l.b16 %v160
    %v235 = vunpack.c.h.b16 %v160
    %v236 = vunpack.c.l.b16 %v161
    %v237 = vunpack.c.h.b16 %v161
    %v238 = vunpack.c.l.b16 %v162
    %v239 = vunpack.c.h.b16 %v162
    %v240 = vunpack.c.l.b16 %v163
    %v241 = vunpack.c.h.b16 %v163
    %v242 = vunpack.c.l.b16 %v164
    %v243 = vunpack.c.h.b16 %v164
    %v244 = vunpack.c.l.b16 %v165
    %v245 = vunpack.c.h.b16 %v165
    %v246 = vunpack.c.l.b16 %v166
    %v247 = vunpack.c.h.b16 %v166
    %v248 = vunpack.c.l.b16 %v167
    %v249 = vunpack.c.h.b16 %v167
    %v250 = vunpack.c.l.b16 %v168
    %v251 = vunpack.c.h.b16 %v168
    %v252 = vunpack.c.l.b16 %v169
    %v253 = vunpack.c.h.b16 %v169
    %v254 = vunpack.c.l.b16 %v170
    %v255 = vunpack.c.h.b16 %v170
    %v256 = vunpack.c.l.b16 %v171
    %v257 = vunpack.c.h.b16 %v171
    %v258 = vunpack.c.l.b16 %v172
    %v259 = vunpack.c.h.b16 %v172
    %v260 = vunpack.c.l.b16 %v173
    %v261 = vunpack.c.h.b16 %v173
    %v262 = vunpack.c.l.b16 %v174
    %v263 = vunpack.c.h.b16 %v174
    %v264 = vunpack.c.l.b16 %v175
    %v265 = vunpack.c.h.b16 %v175
    %v266 = vunpack.c.l.b16 %v176
    %v267 = vunpack.c.h.b16 %v176
    %v268 = vunpack.c.l.b16 %v177
    %v269 = vunpack.c.h.b16 %v177
    %v270 = vunpack.c.l.b16 %v178
    %v271 = vunpack.c.h.b16 %v178
    %v272 = vunpack.c.l.b16 %v179
    %v273 = vunpack.c.h.b16 %v179
    %v274 = vunpack.c.l.b16 %v180
    %v275 = vunpack.c.h.b16 %v180
    %v276 = vunpack.c.l.b16 %v181
    %v277 = vunpack.c.h.b16 %v181
    %v278 = vunpack.c.l.b16 %v182
    %v279 = vunpack.c.h.b16 %v182
    %v280 = vunpack.c.l.b16 %v183
    %v281 = vunpack.c.h.b16 %v183
    %v282 = vunpack.c.l.b16 %v184
    %v283 = vunpack.c.h.b16 %v184
    %v284 = vunpack.c.l.b16 %v185
    %v285 = vunpack.c.h.b16 %v185
    %v286 = vunpack.c.l.b16 %v186
    %v287 = vunpack.c.h.b16 %v186
    %v288 = vunpack.c.l.b16 %v187
    %v289 = vunpack.c.h.b16 %v187
    %v290 = vpack.c.b16 %v228, %v226
    %v291 = vpack.c.b16 %v229, %v227
    %v292 = vpack.c.b16 %v232, %v230
    %v293 = vpack.c.b16 %v233, %v231
    %v294 = vpack.c.b16 %v236, %v234
    %v295 = vpack.c.b16 %v237, %v235
    %v296 = vpack.c.b16 %v240, %v238
    %v297 = vpack.c.b16 %v241, %v239
    %v298 = vpack.c.b16 %v244, %v242
    %v299 = vpack.c.b16 %v245, %v243
    %v300 = vpack.c.b16 %v248, %v246
    %v301 = vpack.c.b16 %v249, %v247
    %v302 = vpack.c.b16 %v252, %v250
    %v303 = vpack.c.b16 %v253, %v251
    %v304 = vpack.c.b16 %v256, %v254
    %v305 = vpack.c.b16 %v257, %v255
    %v306 = vpack.c.b16 %v260, %v258
    %v307 = vpack.c.b16 %v261, %v259
    %v308 = vpack.c.b16 %v264, %v262
    %v309 = vpack.c.b16 %v265, %v263
    %v310 = vpack.c.b16 %v268, %v266
    %v311 = vpack.c.b16 %v269, %v267
    %v312 = vpack.c.b16 %v272, %v270
    %v313 = vpack.c.b16 %v273, %v271
    %v314 = vpack.c.b16 %v276, %v274
    %v315 = vpack.c.b16 %v277, %v275
    %v316 = vpack.c.b16 %v280, %v278
    %v317 = vpack.c.b16 %v281, %v279
    %v318 = vpack.c.b16 %v284, %v282
    %v319 = vpack.c.b16 %v285, %v283
    %v320 = vpack.c.b16 %v288, %v286
    %v321 = vpack.c.b16 %v289, %v287
    %354 = vmatpush.bf16.msra.mxu0 %v304
    %355 = vmatpush.bf16.msra.mxu0 %v302
    %356 = vmatpush.bf16.msra.mxu0 %v300
    %357 = vmatpush.bf16.msra.mxu0 %v298
    %358 = vmatpush.bf16.msra.mxu0 %v296
    %359 = vmatpush.bf16.msra.mxu0 %v294
    %360 = vmatpush.bf16.msra.mxu0 %v292
    %361 = vmatpush.bf16.msra.mxu0 %v290
    %362 = vmatmul.bf16.gmra.mxu0 %v124
    %v363 = vpop.f32.mrf.mxu0
    %v364 = vadd.f32 %v190, %v363
    %v365 = vpop.f32.mrf.mxu0
    %v366 = vadd.f32 %v190, %v365
    %367 = vmatmul.bf16.gmra.mxu0 %v126
    %v368 = vpop.f32.mrf.mxu0
    %v369 = vadd.f32 %v190, %v368
    %v370 = vpop.f32.mrf.mxu0
    %v371 = vadd.f32 %v190, %v370
    %372 = vmatmul.bf16.gmra.mxu0 %v128
    %v373 = vpop.f32.mrf.mxu0
    %v374 = vadd.f32 %v190, %v373
    %v375 = vpop.f32.mrf.mxu0
    %v376 = vadd.f32 %v190, %v375
    %377 = vmatmul.bf16.gmra.mxu0 %v130
    %v378 = vpop.f32.mrf.mxu0
    %v379 = vadd.f32 %v190, %v378
    %v380 = vpop.f32.mrf.mxu0
    %v381 = vadd.f32 %v190, %v380
    %382 = vmatmul.bf16.gmra.mxu0 %v132
    %v383 = vpop.f32.mrf.mxu0
    %v384 = vadd.f32 %v190, %v383
    %v385 = vpop.f32.mrf.mxu0
    %v386 = vadd.f32 %v190, %v385
    %387 = vmatmul.bf16.gmra.mxu0 %v134
    %v388 = vpop.f32.mrf.mxu0
    %v389 = vadd.f32 %v190, %v388
    %v390 = vpop.f32.mrf.mxu0
    %v391 = vadd.f32 %v190, %v390
    %392 = vmatmul.bf16.gmra.mxu0 %v136
    %v393 = vpop.f32.mrf.mxu0
    %v394 = vadd.f32 %v190, %v393
    %v395 = vpop.f32.mrf.mxu0
    %v396 = vadd.f32 %v190, %v395
    %397 = vmatmul.bf16.gmra.mxu0 %v138
    %v398 = vpop.f32.mrf.mxu0
    %v399 = vadd.f32 %v190, %v398
    %v400 = vpop.f32.mrf.mxu0
    %v401 = vadd.f32 %v190, %v400
    %402 = vmatmul.bf16.gmra.mxu0 %v140
    %v403 = vpop.f32.mrf.mxu0
    %v404 = vadd.f32 %v190, %v403
    %v405 = vpop.f32.mrf.mxu0
    %v406 = vadd.f32 %v190, %v405
    %407 = vmatmul.bf16.gmra.mxu0 %v142
    %v408 = vpop.f32.mrf.mxu0
    %v409 = vadd.f32 %v190, %v408
    %v410 = vpop.f32.mrf.mxu0
    %v411 = vadd.f32 %v190, %v410
    %412 = vmatmul.bf16.gmra.mxu0 %v144
    %v413 = vpop.f32.mrf.mxu0
    %v414 = vadd.f32 %v190, %v413
    %v415 = vpop.f32.mrf.mxu0
    %v416 = vadd.f32 %v190, %v415
    %417 = vmatmul.bf16.gmra.mxu0 %v146
    %v418 = vpop.f32.mrf.mxu0
    %v419 = vadd.f32 %v190, %v418
    %v420 = vpop.f32.mrf.mxu0
    %v421 = vadd.f32 %v190, %v420
    %422 = vmatmul.bf16.gmra.mxu0 %v148
    %v423 = vpop.f32.mrf.mxu0
    %v424 = vadd.f32 %v190, %v423
    %v425 = vpop.f32.mrf.mxu0
    %v426 = vadd.f32 %v190, %v425
    %427 = vmatmul.bf16.gmra.mxu0 %v150
    %v428 = vpop.f32.mrf.mxu0
    %v429 = vadd.f32 %v190, %v428
    %v430 = vpop.f32.mrf.mxu0
    %v431 = vadd.f32 %v190, %v430
    %432 = vmatmul.bf16.gmra.mxu0 %v152
    %v433 = vpop.f32.mrf.mxu0
    %v434 = vadd.f32 %v190, %v433
    %v435 = vpop.f32.mrf.mxu0
    %v436 = vadd.f32 %v190, %v435
    %437 = vmatmul.bf16.gmra.mxu0 %v154
    %v438 = vpop.f32.mrf.mxu0
    %v439 = vadd.f32 %v190, %v438
    %v440 = vpop.f32.mrf.mxu0
    %v441 = vadd.f32 %v190, %v440
    %442 = vdwg.mxu0
    %443 = vmatpush.bf16.msra.mxu0 %v320
    %444 = vmatpush.bf16.msra.mxu0 %v318
    %445 = vmatpush.bf16.msra.mxu0 %v316
    %446 = vmatpush.bf16.msra.mxu0 %v314
    %447 = vmatpush.bf16.msra.mxu0 %v312
    %448 = vmatpush.bf16.msra.mxu0 %v310
    %449 = vmatpush.bf16.msra.mxu0 %v308
    %450 = vmatpush.bf16.msra.mxu0 %v306
    %451 = vmatmul.bf16.gmra.mxu0 %v125
    %v452 = vpop.f32.mrf.mxu0
    %v453 = vadd.f32 %v364, %v452
    %v454 = vpop.f32.mrf.mxu0
    %v455 = vadd.f32 %v366, %v454
    %456 = vmatmul.bf16.gmra.mxu0 %v127
    %v457 = vpop.f32.mrf.mxu0
    %v458 = vadd.f32 %v369, %v457
    %v459 = vpop.f32.mrf.mxu0
    %v460 = vadd.f32 %v371, %v459
    %461 = vmatmul.bf16.gmra.mxu0 %v129
    %v462 = vpop.f32.mrf.mxu0
    %v463 = vadd.f32 %v374, %v462
    %v464 = vpop.f32.mrf.mxu0
    %v465 = vadd.f32 %v376, %v464
    %466 = vmatmul.bf16.gmra.mxu0 %v131
    %v467 = vpop.f32.mrf.mxu0
    %v468 = vadd.f32 %v379, %v467
    %v469 = vpop.f32.mrf.mxu0
    %v470 = vadd.f32 %v381, %v469
    %471 = vmatmul.bf16.gmra.mxu0 %v133
    %v472 = vpop.f32.mrf.mxu0
    %v473 = vadd.f32 %v384, %v472
    %v474 = vpop.f32.mrf.mxu0
    %v475 = vadd.f32 %v386, %v474
    %476 = vmatmul.bf16.gmra.mxu0 %v135
    %v477 = vpop.f32.mrf.mxu0
    %v478 = vadd.f32 %v389, %v477
    %v479 = vpop.f32.mrf.mxu0
    %v480 = vadd.f32 %v391, %v479
    %481 = vmatmul.bf16.gmra.mxu0 %v137
    %v482 = vpop.f32.mrf.mxu0
    %v483 = vadd.f32 %v394, %v482
    %v484 = vpop.f32.mrf.mxu0
    %v485 = vadd.f32 %v396, %v484
    %486 = vmatmul.bf16.gmra.mxu0 %v139
    %v487 = vpop.f32.mrf.mxu0
    %v488 = vadd.f32 %v399, %v487
    %v489 = vpop.f32.mrf.mxu0
    %v490 = vadd.f32 %v401, %v489
    %491 = vmatmul.bf16.gmra.mxu0 %v141
    %v492 = vpop.f32.mrf.mxu0
    %v493 = vadd.f32 %v404, %v492
    %v494 = vpop.f32.mrf.mxu0
    %v495 = vadd.f32 %v406, %v494
    %496 = vmatmul.bf16.gmra.mxu0 %v143
    %v497 = vpop.f32.mrf.mxu0
    %v498 = vadd.f32 %v409, %v497
    %v499 = vpop.f32.mrf.mxu0
    %v500 = vadd.f32 %v411, %v499
    %501 = vmatmul.bf16.gmra.mxu0 %v145
    %v502 = vpop.f32.mrf.mxu0
    %v503 = vadd.f32 %v414, %v502
    %v504 = vpop.f32.mrf.mxu0
    %v505 = vadd.f32 %v416, %v504
    %506 = vmatmul.bf16.gmra.mxu0 %v147
    %v507 = vpop.f32.mrf.mxu0
    %v508 = vadd.f32 %v419, %v507
    %v509 = vpop.f32.mrf.mxu0
    %v510 = vadd.f32 %v421, %v509
    %511 = vmatmul.bf16.gmra.mxu0 %v149
    %v512 = vpop.f32.mrf.mxu0
    %v513 = vadd.f32 %v424, %v512
    %v514 = vpop.f32.mrf.mxu0
    %v515 = vadd.f32 %v426, %v514
    %516 = vmatmul.bf16.gmra.mxu0 %v151
    %v517 = vpop.f32.mrf.mxu0
    %v518 = vadd.f32 %v429, %v517
    %v519 = vpop.f32.mrf.mxu0
    %v520 = vadd.f32 %v431, %v519
    %521 = vmatmul.bf16.gmra.mxu0 %v153
    %v522 = vpop.f32.mrf.mxu0
    %v523 = vadd.f32 %v434, %v522
    %v524 = vpop.f32.mrf.mxu0
    %v525 = vadd.f32 %v436, %v524
    %526 = vmatmul.bf16.gmra.mxu0 %v155
    %v527 = vpop.f32.mrf.mxu0
    %v528 = vadd.f32 %v439, %v527
    %v529 = vpop.f32.mrf.mxu0
    %v530 = vadd.f32 %v441, %v529
    %531 = vdwg.mxu0
    %532 = vmatpush.bf16.msra.mxu0 %v305
    %533 = vmatpush.bf16.msra.mxu0 %v303
    %534 = vmatpush.bf16.msra.mxu0 %v301
    %535 = vmatpush.bf16.msra.mxu0 %v299
    %536 = vmatpush.bf16.msra.mxu0 %v297
    %537 = vmatpush.bf16.msra.mxu0 %v295
    %538 = vmatpush.bf16.msra.mxu0 %v293
    %539 = vmatpush.bf16.msra.mxu0 %v291
    %540 = vmatmul.bf16.gmra.mxu0 %v124
    %v541 = vpop.f32.mrf.mxu0
    %v542 = vadd.f32 %v191, %v541
    %v543 = vpop.f32.mrf.mxu0
    %v544 = vadd.f32 %v191, %v543
    %545 = vmatmul.bf16.gmra.mxu0 %v126
    %v546 = vpop.f32.mrf.mxu0
    %v547 = vadd.f32 %v191, %v546
    %v548 = vpop.f32.mrf.mxu0
    %v549 = vadd.f32 %v191, %v548
    %550 = vmatmul.bf16.gmra.mxu0 %v128
    %v551 = vpop.f32.mrf.mxu0
    %v552 = vadd.f32 %v191, %v551
    %v553 = vpop.f32.mrf.mxu0
    %v554 = vadd.f32 %v191, %v553
    %555 = vmatmul.bf16.gmra.mxu0 %v130
    %v556 = vpop.f32.mrf.mxu0
    %v557 = vadd.f32 %v191, %v556
    %v558 = vpop.f32.mrf.mxu0
    %v559 = vadd.f32 %v191, %v558
    %560 = vmatmul.bf16.gmra.mxu0 %v132
    %v561 = vpop.f32.mrf.mxu0
    %v562 = vadd.f32 %v191, %v561
    %v563 = vpop.f32.mrf.mxu0
    %v564 = vadd.f32 %v191, %v563
    %565 = vmatmul.bf16.gmra.mxu0 %v134
    %v566 = vpop.f32.mrf.mxu0
    %v567 = vadd.f32 %v191, %v566
    %v568 = vpop.f32.mrf.mxu0
    %v569 = vadd.f32 %v191, %v568
    %570 = vmatmul.bf16.gmra.mxu0 %v136
    %v571 = vpop.f32.mrf.mxu0
    %v572 = vadd.f32 %v191, %v571
    %v573 = vpop.f32.mrf.mxu0
    %v574 = vadd.f32 %v191, %v573
    %575 = vmatmul.bf16.gmra.mxu0 %v138
    %v576 = vpop.f32.mrf.mxu0
    %v577 = vadd.f32 %v191, %v576
    %v578 = vpop.f32.mrf.mxu0
    %v579 = vadd.f32 %v191, %v578
    %580 = vmatmul.bf16.gmra.mxu0 %v140
    %v581 = vpop.f32.mrf.mxu0
    %v582 = vadd.f32 %v191, %v581
    %v583 = vpop.f32.mrf.mxu0
    %v584 = vadd.f32 %v191, %v583
    %585 = vmatmul.bf16.gmra.mxu0 %v142
    %v586 = vpop.f32.mrf.mxu0
    %v587 = vadd.f32 %v191, %v586
    %v588 = vpop.f32.mrf.mxu0
    %v589 = vadd.f32 %v191, %v588
    %590 = vmatmul.bf16.gmra.mxu0 %v144
    %v591 = vpop.f32.mrf.mxu0
    %v592 = vadd.f32 %v191, %v591
    %v593 = vpop.f32.mrf.mxu0
    %v594 = vadd.f32 %v191, %v593
    %595 = vmatmul.bf16.gmra.mxu0 %v146
    %v596 = vpop.f32.mrf.mxu0
    %v597 = vadd.f32 %v191, %v596
    %v598 = vpop.f32.mrf.mxu0
    %v599 = vadd.f32 %v191, %v598
    %600 = vmatmul.bf16.gmra.mxu0 %v148
    %v601 = vpop.f32.mrf.mxu0
    %v602 = vadd.f32 %v191, %v601
    %v603 = vpop.f32.mrf.mxu0
    %v604 = vadd.f32 %v191, %v603
    %605 = vmatmul.bf16.gmra.mxu0 %v150
    %v606 = vpop.f32.mrf.mxu0
    %v607 = vadd.f32 %v191, %v606
    %v608 = vpop.f32.mrf.mxu0
    %v609 = vadd.f32 %v191, %v608
    %610 = vmatmul.bf16.gmra.mxu0 %v152
    %v611 = vpop.f32.mrf.mxu0
    %v612 = vadd.f32 %v191, %v611
    %v613 = vpop.f32.mrf.mxu0
    %v614 = vadd.f32 %v191, %v613
    %615 = vmatmul.bf16.gmra.mxu0 %v154
    %v616 = vpop.f32.mrf.mxu0
    %v617 = vadd.f32 %v191, %v616
    %v618 = vpop.f32.mrf.mxu0
    %v619 = vadd.f32 %v191, %v618
    %620 = vdwg.mxu0
    %621 = vmatpush.bf16.msra.mxu0 %v321
    %622 = vmatpush.bf16.msra.mxu0 %v319
    %623 = vmatpush.bf16.msra.mxu0 %v317
    %624 = vmatpush.bf16.msra.mxu0 %v315
    %625 = vmatpush.bf16.msra.mxu0 %v313
    %626 = vmatpush.bf16.msra.mxu0 %v311
    %627 = vmatpush.bf16.msra.mxu0 %v309
    %628 = vmatpush.bf16.msra.mxu0 %v307
    %629 = vmatmul.bf16.gmra.mxu0 %v125
    %v630 = vpop.f32.mrf.mxu0
    %v631 = vadd.f32 %v542, %v630
    %v632 = vpop.f32.mrf.mxu0
    %v633 = vadd.f32 %v544, %v632
    %634 = vmatmul.bf16.gmra.mxu0 %v127
    %v635 = vpop.f32.mrf.mxu0
    %v636 = vadd.f32 %v547, %v635
    %v637 = vpop.f32.mrf.mxu0
    %v638 = vadd.f32 %v549, %v637
    %639 = vmatmul.bf16.gmra.mxu0 %v129
    %v640 = vpop.f32.mrf.mxu0
    %v641 = vadd.f32 %v552, %v640
    %v642 = vpop.f32.mrf.mxu0
    %v643 = vadd.f32 %v554, %v642
    %644 = vmatmul.bf16.gmra.mxu0 %v131
    %v645 = vpop.f32.mrf.mxu0
    %v646 = vadd.f32 %v557, %v645
    %v647 = vpop.f32.mrf.mxu0
    %v648 = vadd.f32 %v559, %v647
    %649 = vmatmul.bf16.gmra.mxu0 %v133
    %v650 = vpop.f32.mrf.mxu0
    %v651 = vadd.f32 %v562, %v650
    %v652 = vpop.f32.mrf.mxu0
    %v653 = vadd.f32 %v564, %v652
    %654 = vmatmul.bf16.gmra.mxu0 %v135
    %v655 = vpop.f32.mrf.mxu0
    %v656 = vadd.f32 %v567, %v655
    %v657 = vpop.f32.mrf.mxu0
    %v658 = vadd.f32 %v569, %v657
    %659 = vmatmul.bf16.gmra.mxu0 %v137
    %v660 = vpop.f32.mrf.mxu0
    %v661 = vadd.f32 %v572, %v660
    %v662 = vpop.f32.mrf.mxu0
    %v663 = vadd.f32 %v574, %v662
    %664 = vmatmul.bf16.gmra.mxu0 %v139
    %v665 = vpop.f32.mrf.mxu0
    %v666 = vadd.f32 %v577, %v665
    %v667 = vpop.f32.mrf.mxu0
    %v668 = vadd.f32 %v579, %v667
    %669 = vmatmul.bf16.gmra.mxu0 %v141
    %v670 = vpop.f32.mrf.mxu0
    %v671 = vadd.f32 %v582, %v670
    %v672 = vpop.f32.mrf.mxu0
    %v673 = vadd.f32 %v584, %v672
    %674 = vmatmul.bf16.gmra.mxu0 %v143
    %v675 = vpop.f32.mrf.mxu0
    %v676 = vadd.f32 %v587, %v675
    %v677 = vpop.f32.mrf.mxu0
    %v678 = vadd.f32 %v589, %v677
    %679 = vmatmul.bf16.gmra.mxu0 %v145
    %v680 = vpop.f32.mrf.mxu0
    %v681 = vadd.f32 %v592, %v680
    %v682 = vpop.f32.mrf.mxu0
    %v683 = vadd.f32 %v594, %v682
    %684 = vmatmul.bf16.gmra.mxu0 %v147
    %v685 = vpop.f32.mrf.mxu0
    %v686 = vadd.f32 %v597, %v685
    %v687 = vpop.f32.mrf.mxu0
    %v688 = vadd.f32 %v599, %v687
    %689 = vmatmul.bf16.gmra.mxu0 %v149
    %v690 = vpop.f32.mrf.mxu0
    %v691 = vadd.f32 %v602, %v690
    %v692 = vpop.f32.mrf.mxu0
    %v693 = vadd.f32 %v604, %v692
    %694 = vmatmul.bf16.gmra.mxu0 %v151
    %v695 = vpop.f32.mrf.mxu0
    %v696 = vadd.f32 %v607, %v695
    %v697 = vpop.f32.mrf.mxu0
    %v698 = vadd.f32 %v609, %v697
    %699 = vmatmul.bf16.gmra.mxu0 %v153
    %v700 = vpop.f32.mrf.mxu0
    %v701 = vadd.f32 %v612, %v700
    %v702 = vpop.f32.mrf.mxu0
    %v703 = vadd.f32 %v614, %v702
    %704 = vmatmul.bf16.gmra.mxu0 %v155
    %v705 = vpop.f32.mrf.mxu0
    %v706 = vadd.f32 %v617, %v705
    %v707 = vpop.f32.mrf.mxu0
    %v708 = vadd.f32 %v619, %v707
    %709 = vdwg.mxu0
    %s710 = scalar_lea.vmem [#allocation5], 256
    %v711 = vld [vmem:[%s710] sm:$0xff]
    %v712 = vld [vmem:[%s710 + $0x8] sm:$0xff]
    %v713 = vld [vmem:[%s710 + $0x10] sm:$0xff]
    %v714 = vld [vmem:[%s710 + $0x18] sm:$0xff]
    %v715 = vld [vmem:[%s710 + $0x20] sm:$0xff]
    %v716 = vld [vmem:[%s710 + $0x28] sm:$0xff]
    %v717 = vld [vmem:[%s710 + $0x30] sm:$0xff]
    %v718 = vld [vmem:[%s710 + $0x38] sm:$0xff]
    %v719 = vld [vmem:[%s710 + $0x40] sm:$0xff]
    %v720 = vld [vmem:[%s710 + $0x48] sm:$0xff]
    %v721 = vld [vmem:[%s710 + $0x50] sm:$0xff]
    %v722 = vld [vmem:[%s710 + $0x58] sm:$0xff]
    %v723 = vld [vmem:[%s710 + $0x60] sm:$0xff]
    %v724 = vld [vmem:[%s710 + $0x68] sm:$0xff]
    %v725 = vld [vmem:[%s710 + $0x70] sm:$0xff]
    %v726 = vld [vmem:[%s710 + $0x78] sm:$0xff]
    %v727 = vld [vmem:[%s710 + $0x80] sm:$0xff]
    %v728 = vld [vmem:[%s710 + $0x88] sm:$0xff]
    %v729 = vld [vmem:[%s710 + $0x90] sm:$0xff]
    %v730 = vld [vmem:[%s710 + $0x98] sm:$0xff]
    %v731 = vld [vmem:[%s710 + $0xa0] sm:$0xff]
    %v732 = vld [vmem:[%s710 + $0xa8] sm:$0xff]
    %v733 = vld [vmem:[%s710 + $0xb0] sm:$0xff]
    %v734 = vld [vmem:[%s710 + $0xb8] sm:$0xff]
    %v735 = vld [vmem:[%s710 + $0xc0] sm:$0xff]
    %v736 = vld [vmem:[%s710 + $0xc8] sm:$0xff]
    %v737 = vld [vmem:[%s710 + $0xd0] sm:$0xff]
    %v738 = vld [vmem:[%s710 + $0xd8] sm:$0xff]
    %v739 = vld [vmem:[%s710 + $0xe0] sm:$0xff]
    %v740 = vld [vmem:[%s710 + $0xe8] sm:$0xff]
    %v741 = vld [vmem:[%s710 + $0xf0] sm:$0xff]
    %v742 = vld [vmem:[%s710 + $0xf8] sm:$0xff]
    %s743 = scalar_lea.vmem [#allocation7], 1
    %v744 = vld [vmem:[%s743] ss:$2 sm:$0x3]
    %v746 = vperm.slane %v744, 0
    %v747 = vperm.slane %v744, 1
    %v782 = vunpack.c.l.b16 %v711
    %v783 = vunpack.c.h.b16 %v711
    %v784 = vunpack.c.l.b16 %v712
    %v785 = vunpack.c.h.b16 %v712
    %v786 = vunpack.c.l.b16 %v713
    %v787 = vunpack.c.h.b16 %v713
    %v788 = vunpack.c.l.b16 %v714
    %v789 = vunpack.c.h.b16 %v714
    %v790 = vunpack.c.l.b16 %v715
    %v791 = vunpack.c.h.b16 %v715
    %v792 = vunpack.c.l.b16 %v716
    %v793 = vunpack.c.h.b16 %v716
    %v794 = vunpack.c.l.b16 %v717
    %v795 = vunpack.c.h.b16 %v717
    %v796 = vunpack.c.l.b16 %v718
    %v797 = vunpack.c.h.b16 %v718
    %v798 = vunpack.c.l.b16 %v719
    %v799 = vunpack.c.h.b16 %v719
    %v800 = vunpack.c.l.b16 %v720
    %v801 = vunpack.c.h.b16 %v720
    %v802 = vunpack.c.l.b16 %v721
    %v803 = vunpack.c.h.b16 %v721
    %v804 = vunpack.c.l.b16 %v722
    %v805 = vunpack.c.h.b16 %v722
    %v806 = vunpack.c.l.b16 %v723
    %v807 = vunpack.c.h.b16 %v723
    %v808 = vunpack.c.l.b16 %v724
    %v809 = vunpack.c.h.b16 %v724
    %v810 = vunpack.c.l.b16 %v725
    %v811 = vunpack.c.h.b16 %v725
    %v812 = vunpack.c.l.b16 %v726
    %v813 = vunpack.c.h.b16 %v726
    %v814 = vunpack.c.l.b16 %v727
    %v815 = vunpack.c.h.b16 %v727
    %v816 = vunpack.c.l.b16 %v728
    %v817 = vunpack.c.h.b16 %v728
    %v818 = vunpack.c.l.b16 %v729
    %v819 = vunpack.c.h.b16 %v729
    %v820 = vunpack.c.l.b16 %v730
    %v821 = vunpack.c.h.b16 %v730
    %v822 = vunpack.c.l.b16 %v731
    %v823 = vunpack.c.h.b16 %v731
    %v824 = vunpack.c.l.b16 %v732
    %v825 = vunpack.c.h.b16 %v732
    %v826 = vunpack.c.l.b16 %v733
    %v827 = vunpack.c.h.b16 %v733
    %v828 = vunpack.c.l.b16 %v734
    %v829 = vunpack.c.h.b16 %v734
    %v830 = vunpack.c.l.b16 %v735
    %v831 = vunpack.c.h.b16 %v735
    %v832 = vunpack.c.l.b16 %v736
    %v833 = vunpack.c.h.b16 %v736
    %v834 = vunpack.c.l.b16 %v737
    %v835 = vunpack.c.h.b16 %v737
    %v836 = vunpack.c.l.b16 %v738
    %v837 = vunpack.c.h.b16 %v738
    %v838 = vunpack.c.l.b16 %v739
    %v839 = vunpack.c.h.b16 %v739
    %v840 = vunpack.c.l.b16 %v740
    %v841 = vunpack.c.h.b16 %v740
    %v842 = vunpack.c.l.b16 %v741
    %v843 = vunpack.c.h.b16 %v741
    %v844 = vunpack.c.l.b16 %v742
    %v845 = vunpack.c.h.b16 %v742
    %v846 = vpack.c.b16 %v784, %v782
    %v847 = vpack.c.b16 %v785, %v783
    %v848 = vpack.c.b16 %v788, %v786
    %v849 = vpack.c.b16 %v789, %v787
    %v850 = vpack.c.b16 %v792, %v790
    %v851 = vpack.c.b16 %v793, %v791
    %v852 = vpack.c.b16 %v796, %v794
    %v853 = vpack.c.b16 %v797, %v795
    %v854 = vpack.c.b16 %v800, %v798
    %v855 = vpack.c.b16 %v801, %v799
    %v856 = vpack.c.b16 %v804, %v802
    %v857 = vpack.c.b16 %v805, %v803
    %v858 = vpack.c.b16 %v808, %v806
    %v859 = vpack.c.b16 %v809, %v807
    %v860 = vpack.c.b16 %v812, %v810
    %v861 = vpack.c.b16 %v813, %v811
    %v862 = vpack.c.b16 %v816, %v814
    %v863 = vpack.c.b16 %v817, %v815
    %v864 = vpack.c.b16 %v820, %v818
    %v865 = vpack.c.b16 %v821, %v819
    %v866 = vpack.c.b16 %v824, %v822
    %v867 = vpack.c.b16 %v825, %v823
    %v868 = vpack.c.b16 %v828, %v826
    %v869 = vpack.c.b16 %v829, %v827
    %v870 = vpack.c.b16 %v832, %v830
    %v871 = vpack.c.b16 %v833, %v831
    %v872 = vpack.c.b16 %v836, %v834
    %v873 = vpack.c.b16 %v837, %v835
    %v874 = vpack.c.b16 %v840, %v838
    %v875 = vpack.c.b16 %v841, %v839
    %v876 = vpack.c.b16 %v844, %v842
    %v877 = vpack.c.b16 %v845, %v843
    %910 = vmatpush.bf16.msra.mxu0 %v860
    %911 = vmatpush.bf16.msra.mxu0 %v858
    %912 = vmatpush.bf16.msra.mxu0 %v856
    %913 = vmatpush.bf16.msra.mxu0 %v854
    %914 = vmatpush.bf16.msra.mxu0 %v852
    %915 = vmatpush.bf16.msra.mxu0 %v850
    %916 = vmatpush.bf16.msra.mxu0 %v848
    %917 = vmatpush.bf16.msra.mxu0 %v846
    %918 = vmatmul.bf16.gmra.mxu0 %v124
    %v919 = vpop.f32.mrf.mxu0
    %v920 = vadd.f32 %v746, %v919
    %v921 = vpop.f32.mrf.mxu0
    %v922 = vadd.f32 %v746, %v921
    %923 = vmatmul.bf16.gmra.mxu0 %v126
    %v924 = vpop.f32.mrf.mxu0
    %v925 = vadd.f32 %v746, %v924
    %v926 = vpop.f32.mrf.mxu0
    %v927 = vadd.f32 %v746, %v926
    %928 = vmatmul.bf16.gmra.mxu0 %v128
    %v929 = vpop.f32.mrf.mxu0
    %v930 = vadd.f32 %v746, %v929
    %v931 = vpop.f32.mrf.mxu0
    %v932 = vadd.f32 %v746, %v931
    %933 = vmatmul.bf16.gmra.mxu0 %v130
    %v934 = vpop.f32.mrf.mxu0
    %v935 = vadd.f32 %v746, %v934
    %v936 = vpop.f32.mrf.mxu0
    %v937 = vadd.f32 %v746, %v936
    %938 = vmatmul.bf16.gmra.mxu0 %v132
    %v939 = vpop.f32.mrf.mxu0
    %v940 = vadd.f32 %v746, %v939
    %v941 = vpop.f32.mrf.mxu0
    %v942 = vadd.f32 %v746, %v941
    %943 = vmatmul.bf16.gmra.mxu0 %v134
    %v944 = vpop.f32.mrf.mxu0
    %v945 = vadd.f32 %v746, %v944
    %v946 = vpop.f32.mrf.mxu0
    %v947 = vadd.f32 %v746, %v946
    %948 = vmatmul.bf16.gmra.mxu0 %v136
    %v949 = vpop.f32.mrf.mxu0
    %v950 = vadd.f32 %v746, %v949
    %v951 = vpop.f32.mrf.mxu0
    %v952 = vadd.f32 %v746, %v951
    %953 = vmatmul.bf16.gmra.mxu0 %v138
    %v954 = vpop.f32.mrf.mxu0
    %v955 = vadd.f32 %v746, %v954
    %v956 = vpop.f32.mrf.mxu0
    %v957 = vadd.f32 %v746, %v956
    %958 = vmatmul.bf16.gmra.mxu0 %v140
    %v959 = vpop.f32.mrf.mxu0
    %v960 = vadd.f32 %v746, %v959
    %v961 = vpop.f32.mrf.mxu0
    %v962 = vadd.f32 %v746, %v961
    %963 = vmatmul.bf16.gmra.mxu0 %v142
    %v964 = vpop.f32.mrf.mxu0
    %v965 = vadd.f32 %v746, %v964
    %v966 = vpop.f32.mrf.mxu0
    %v967 = vadd.f32 %v746, %v966
    %968 = vmatmul.bf16.gmra.mxu0 %v144
    %v969 = vpop.f32.mrf.mxu0
    %v970 = vadd.f32 %v746, %v969
    %v971 = vpop.f32.mrf.mxu0
    %v972 = vadd.f32 %v746, %v971
    %973 = vmatmul.bf16.gmra.mxu0 %v146
    %v974 = vpop.f32.mrf.mxu0
    %v975 = vadd.f32 %v746, %v974
    %v976 = vpop.f32.mrf.mxu0
    %v977 = vadd.f32 %v746, %v976
    %978 = vmatmul.bf16.gmra.mxu0 %v148
    %v979 = vpop.f32.mrf.mxu0
    %v980 = vadd.f32 %v746, %v979
    %v981 = vpop.f32.mrf.mxu0
    %v982 = vadd.f32 %v746, %v981
    %983 = vmatmul.bf16.gmra.mxu0 %v150
    %v984 = vpop.f32.mrf.mxu0
    %v985 = vadd.f32 %v746, %v984
    %v986 = vpop.f32.mrf.mxu0
    %v987 = vadd.f32 %v746, %v986
    %988 = vmatmul.bf16.gmra.mxu0 %v152
    %v989 = vpop.f32.mrf.mxu0
    %v990 = vadd.f32 %v746, %v989
    %v991 = vpop.f32.mrf.mxu0
    %v992 = vadd.f32 %v746, %v991
    %993 = vmatmul.bf16.gmra.mxu0 %v154
    %v994 = vpop.f32.mrf.mxu0
    %v995 = vadd.f32 %v746, %v994
    %v996 = vpop.f32.mrf.mxu0
    %v997 = vadd.f32 %v746, %v996
    %998 = vdwg.mxu0
    %999 = vmatpush.bf16.msra.mxu0 %v876
    %1000 = vmatpush.bf16.msra.mxu0 %v874
    %1001 = vmatpush.bf16.msra.mxu0 %v872
    %1002 = vmatpush.bf16.msra.mxu0 %v870
    %1003 = vmatpush.bf16.msra.mxu0 %v868
    %1004 = vmatpush.bf16.msra.mxu0 %v866
    %1005 = vmatpush.bf16.msra.mxu0 %v864
    %1006 = vmatpush.bf16.msra.mxu0 %v862
    %1007 = vmatmul.bf16.gmra.mxu0 %v125
    %v1008 = vpop.f32.mrf.mxu0
    %v1009 = vadd.f32 %v920, %v1008
    %v1010 = vpop.f32.mrf.mxu0
    %v1011 = vadd.f32 %v922, %v1010
    %1012 = vmatmul.bf16.gmra.mxu0 %v127
    %v1013 = vpop.f32.mrf.mxu0
    %v1014 = vadd.f32 %v925, %v1013
    %v1015 = vpop.f32.mrf.mxu0
    %v1016 = vadd.f32 %v927, %v1015
    %1017 = vmatmul.bf16.gmra.mxu0 %v129
    %v1018 = vpop.f32.mrf.mxu0
    %v1019 = vadd.f32 %v930, %v1018
    %v1020 = vpop.f32.mrf.mxu0
    %v1021 = vadd.f32 %v932, %v1020
    %1022 = vmatmul.bf16.gmra.mxu0 %v131
    %v1023 = vpop.f32.mrf.mxu0
    %v1024 = vadd.f32 %v935, %v1023
    %v1025 = vpop.f32.mrf.mxu0
    %v1026 = vadd.f32 %v937, %v1025
    %1027 = vmatmul.bf16.gmra.mxu0 %v133
    %v1028 = vpop.f32.mrf.mxu0
    %v1029 = vadd.f32 %v940, %v1028
    %v1030 = vpop.f32.mrf.mxu0
    %v1031 = vadd.f32 %v942, %v1030
    %1032 = vmatmul.bf16.gmra.mxu0 %v135
    %v1033 = vpop.f32.mrf.mxu0
    %v1034 = vadd.f32 %v945, %v1033
    %v1035 = vpop.f32.mrf.mxu0
    %v1036 = vadd.f32 %v947, %v1035
    %1037 = vmatmul.bf16.gmra.mxu0 %v137
    %v1038 = vpop.f32.mrf.mxu0
    %v1039 = vadd.f32 %v950, %v1038
    %v1040 = vpop.f32.mrf.mxu0
    %v1041 = vadd.f32 %v952, %v1040
    %1042 = vmatmul.bf16.gmra.mxu0 %v139
    %v1043 = vpop.f32.mrf.mxu0
    %v1044 = vadd.f32 %v955, %v1043
    %v1045 = vpop.f32.mrf.mxu0
    %v1046 = vadd.f32 %v957, %v1045
    %1047 = vmatmul.bf16.gmra.mxu0 %v141
    %v1048 = vpop.f32.mrf.mxu0
    %v1049 = vadd.f32 %v960, %v1048
    %v1050 = vpop.f32.mrf.mxu0
    %v1051 = vadd.f32 %v962, %v1050
    %1052 = vmatmul.bf16.gmra.mxu0 %v143
    %v1053 = vpop.f32.mrf.mxu0
    %v1054 = vadd.f32 %v965, %v1053
    %v1055 = vpop.f32.mrf.mxu0
    %v1056 = vadd.f32 %v967, %v1055
    %1057 = vmatmul.bf16.gmra.mxu0 %v145
    %v1058 = vpop.f32.mrf.mxu0
    %v1059 = vadd.f32 %v970, %v1058
    %v1060 = vpop.f32.mrf.mxu0
    %v1061 = vadd.f32 %v972, %v1060
    %1062 = vmatmul.bf16.gmra.mxu0 %v147
    %v1063 = vpop.f32.mrf.mxu0
    %v1064 = vadd.f32 %v975, %v1063
    %v1065 = vpop.f32.mrf.mxu0
    %v1066 = vadd.f32 %v977, %v1065
    %1067 = vmatmul.bf16.gmra.mxu0 %v149
    %v1068 = vpop.f32.mrf.mxu0
    %v1069 = vadd.f32 %v980, %v1068
    %v1070 = vpop.f32.mrf.mxu0
    %v1071 = vadd.f32 %v982, %v1070
    %1072 = vmatmul.bf16.gmra.mxu0 %v151
    %v1073 = vpop.f32.mrf.mxu0
    %v1074 = vadd.f32 %v985, %v1073
    %v1075 = vpop.f32.mrf.mxu0
    %v1076 = vadd.f32 %v987, %v1075
    %1077 = vmatmul.bf16.gmra.mxu0 %v153
    %v1078 = vpop.f32.mrf.mxu0
    %v1079 = vadd.f32 %v990, %v1078
    %v1080 = vpop.f32.mrf.mxu0
    %v1081 = vadd.f32 %v992, %v1080
    %1082 = vmatmul.bf16.gmra.mxu0 %v155
    %v1083 = vpop.f32.mrf.mxu0
    %v1084 = vadd.f32 %v995, %v1083
    %v1085 = vpop.f32.mrf.mxu0
    %v1086 = vadd.f32 %v997, %v1085
    %1087 = vdwg.mxu0
    %1088 = vmatpush.bf16.msra.mxu0 %v861
    %1089 = vmatpush.bf16.msra.mxu0 %v859
    %1090 = vmatpush.bf16.msra.mxu0 %v857
    %1091 = vmatpush.bf16.msra.mxu0 %v855
    %1092 = vmatpush.bf16.msra.mxu0 %v853
    %1093 = vmatpush.bf16.msra.mxu0 %v851
    %1094 = vmatpush.bf16.msra.mxu0 %v849
    %1095 = vmatpush.bf16.msra.mxu0 %v847
    %1096 = vmatmul.bf16.gmra.mxu0 %v124
    %v1097 = vpop.f32.mrf.mxu0
    %v1098 = vadd.f32 %v747, %v1097
    %v1099 = vpop.f32.mrf.mxu0
    %v1100 = vadd.f32 %v747, %v1099
    %1101 = vmatmul.bf16.gmra.mxu0 %v126
    %v1102 = vpop.f32.mrf.mxu0
    %v1103 = vadd.f32 %v747, %v1102
    %v1104 = vpop.f32.mrf.mxu0
    %v1105 = vadd.f32 %v747, %v1104
    %1106 = vmatmul.bf16.gmra.mxu0 %v128
    %v1107 = vpop.f32.mrf.mxu0
    %v1108 = vadd.f32 %v747, %v1107
    %v1109 = vpop.f32.mrf.mxu0
    %v1110 = vadd.f32 %v747, %v1109
    %1111 = vmatmul.bf16.gmra.mxu0 %v130
    %v1112 = vpop.f32.mrf.mxu0
    %v1113 = vadd.f32 %v747, %v1112
    %v1114 = vpop.f32.mrf.mxu0
    %v1115 = vadd.f32 %v747, %v1114
    %1116 = vmatmul.bf16.gmra.mxu0 %v132
    %v1117 = vpop.f32.mrf.mxu0
    %v1118 = vadd.f32 %v747, %v1117
    %v1119 = vpop.f32.mrf.mxu0
    %v1120 = vadd.f32 %v747, %v1119
    %1121 = vmatmul.bf16.gmra.mxu0 %v134
    %v1122 = vpop.f32.mrf.mxu0
    %v1123 = vadd.f32 %v747, %v1122
    %v1124 = vpop.f32.mrf.mxu0
    %v1125 = vadd.f32 %v747, %v1124
    %1126 = vmatmul.bf16.gmra.mxu0 %v136
    %v1127 = vpop.f32.mrf.mxu0
    %v1128 = vadd.f32 %v747, %v1127
    %v1129 = vpop.f32.mrf.mxu0
    %v1130 = vadd.f32 %v747, %v1129
    %1131 = vmatmul.bf16.gmra.mxu0 %v138
    %v1132 = vpop.f32.mrf.mxu0
    %v1133 = vadd.f32 %v747, %v1132
    %v1134 = vpop.f32.mrf.mxu0
    %v1135 = vadd.f32 %v747, %v1134
    %1136 = vmatmul.bf16.gmra.mxu0 %v140
    %v1137 = vpop.f32.mrf.mxu0
    %v1138 = vadd.f32 %v747, %v1137
    %v1139 = vpop.f32.mrf.mxu0
    %v1140 = vadd.f32 %v747, %v1139
    %1141 = vmatmul.bf16.gmra.mxu0 %v142
    %v1142 = vpop.f32.mrf.mxu0
    %v1143 = vadd.f32 %v747, %v1142
    %v1144 = vpop.f32.mrf.mxu0
    %v1145 = vadd.f32 %v747, %v1144
    %1146 = vmatmul.bf16.gmra.mxu0 %v144
    %v1147 = vpop.f32.mrf.mxu0
    %v1148 = vadd.f32 %v747, %v1147
    %v1149 = vpop.f32.mrf.mxu0
    %v1150 = vadd.f32 %v747, %v1149
    %1151 = vmatmul.bf16.gmra.mxu0 %v146
    %v1152 = vpop.f32.mrf.mxu0
    %v1153 = vadd.f32 %v747, %v1152
    %v1154 = vpop.f32.mrf.mxu0
    %v1155 = vadd.f32 %v747, %v1154
    %1156 = vmatmul.bf16.gmra.mxu0 %v148
    %v1157 = vpop.f32.mrf.mxu0
    %v1158 = vadd.f32 %v747, %v1157
    %v1159 = vpop.f32.mrf.mxu0
    %v1160 = vadd.f32 %v747, %v1159
    %1161 = vmatmul.bf16.gmra.mxu0 %v150
    %v1162 = vpop.f32.mrf.mxu0
    %v1163 = vadd.f32 %v747, %v1162
    %v1164 = vpop.f32.mrf.mxu0
    %v1165 = vadd.f32 %v747, %v1164
    %1166 = vmatmul.bf16.gmra.mxu0 %v152
    %v1167 = vpop.f32.mrf.mxu0
    %v1168 = vadd.f32 %v747, %v1167
    %v1169 = vpop.f32.mrf.mxu0
    %v1170 = vadd.f32 %v747, %v1169
    %1171 = vmatmul.bf16.gmra.mxu0 %v154
    %v1172 = vpop.f32.mrf.mxu0
    %v1173 = vadd.f32 %v747, %v1172
    %v1174 = vpop.f32.mrf.mxu0
    %v1175 = vadd.f32 %v747, %v1174
    %1176 = vdwg.mxu0
    %1177 = vmatpush.bf16.msra.mxu0 %v877
    %1178 = vmatpush.bf16.msra.mxu0 %v875
    %1179 = vmatpush.bf16.msra.mxu0 %v873
    %1180 = vmatpush.bf16.msra.mxu0 %v871
    %1181 = vmatpush.bf16.msra.mxu0 %v869
    %1182 = vmatpush.bf16.msra.mxu0 %v867
    %1183 = vmatpush.bf16.msra.mxu0 %v865
    %1184 = vmatpush.bf16.msra.mxu0 %v863
    %1185 = vmatmul.bf16.gmra.mxu0 %v125
    %v1186 = vpop.f32.mrf.mxu0
    %v1187 = vadd.f32 %v1098, %v1186
    %v1188 = vpop.f32.mrf.mxu0
    %v1189 = vadd.f32 %v1100, %v1188
    %1190 = vmatmul.bf16.gmra.mxu0 %v127
    %v1191 = vpop.f32.mrf.mxu0
    %v1192 = vadd.f32 %v1103, %v1191
    %v1193 = vpop.f32.mrf.mxu0
    %v1194 = vadd.f32 %v1105, %v1193
    %1195 = vmatmul.bf16.gmra.mxu0 %v129
    %v1196 = vpop.f32.mrf.mxu0
    %v1197 = vadd.f32 %v1108, %v1196
    %v1198 = vpop.f32.mrf.mxu0
    %v1199 = vadd.f32 %v1110, %v1198
    %1200 = vmatmul.bf16.gmra.mxu0 %v131
    %v1201 = vpop.f32.mrf.mxu0
    %v1202 = vadd.f32 %v1113, %v1201
    %v1203 = vpop.f32.mrf.mxu0
    %v1204 = vadd.f32 %v1115, %v1203
    %1205 = vmatmul.bf16.gmra.mxu0 %v133
    %v1206 = vpop.f32.mrf.mxu0
    %v1207 = vadd.f32 %v1118, %v1206
    %v1208 = vpop.f32.mrf.mxu0
    %v1209 = vadd.f32 %v1120, %v1208
    %1210 = vmatmul.bf16.gmra.mxu0 %v135
    %v1211 = vpop.f32.mrf.mxu0
    %v1212 = vadd.f32 %v1123, %v1211
    %v1213 = vpop.f32.mrf.mxu0
    %v1214 = vadd.f32 %v1125, %v1213
    %1215 = vmatmul.bf16.gmra.mxu0 %v137
    %v1216 = vpop.f32.mrf.mxu0
    %v1217 = vadd.f32 %v1128, %v1216
    %v1218 = vpop.f32.mrf.mxu0
    %v1219 = vadd.f32 %v1130, %v1218
    %1220 = vmatmul.bf16.gmra.mxu0 %v139
    %v1221 = vpop.f32.mrf.mxu0
    %v1222 = vadd.f32 %v1133, %v1221
    %v1223 = vpop.f32.mrf.mxu0
    %v1224 = vadd.f32 %v1135, %v1223
    %1225 = vmatmul.bf16.gmra.mxu0 %v141
    %v1226 = vpop.f32.mrf.mxu0
    %v1227 = vadd.f32 %v1138, %v1226
    %v1228 = vpop.f32.mrf.mxu0
    %v1229 = vadd.f32 %v1140, %v1228
    %1230 = vmatmul.bf16.gmra.mxu0 %v143
    %v1231 = vpop.f32.mrf.mxu0
    %v1232 = vadd.f32 %v1143, %v1231
    %v1233 = vpop.f32.mrf.mxu0
    %v1234 = vadd.f32 %v1145, %v1233
    %1235 = vmatmul.bf16.gmra.mxu0 %v145
    %v1236 = vpop.f32.mrf.mxu0
    %v1237 = vadd.f32 %v1148, %v1236
    %v1238 = vpop.f32.mrf.mxu0
    %v1239 = vadd.f32 %v1150, %v1238
    %1240 = vmatmul.bf16.gmra.mxu0 %v147
    %v1241 = vpop.f32.mrf.mxu0
    %v1242 = vadd.f32 %v1153, %v1241
    %v1243 = vpop.f32.mrf.mxu0
    %v1244 = vadd.f32 %v1155, %v1243
    %1245 = vmatmul.bf16.gmra.mxu0 %v149
    %v1246 = vpop.f32.mrf.mxu0
    %v1247 = vadd.f32 %v1158, %v1246
    %v1248 = vpop.f32.mrf.mxu0
    %v1249 = vadd.f32 %v1160, %v1248
    %1250 = vmatmul.bf16.gmra.mxu0 %v151
    %v1251 = vpop.f32.mrf.mxu0
    %v1252 = vadd.f32 %v1163, %v1251
    %v1253 = vpop.f32.mrf.mxu0
    %v1254 = vadd.f32 %v1165, %v1253
    %1255 = vmatmul.bf16.gmra.mxu0 %v153
    %v1256 = vpop.f32.mrf.mxu0
    %v1257 = vadd.f32 %v1168, %v1256
    %v1258 = vpop.f32.mrf.mxu0
    %v1259 = vadd.f32 %v1170, %v1258
    %1260 = vmatmul.bf16.gmra.mxu0 %v155
    %v1261 = vpop.f32.mrf.mxu0
    %v1262 = vadd.f32 %v1173, %v1261
    %v1263 = vpop.f32.mrf.mxu0
    %v1264 = vadd.f32 %v1175, %v1263
    %1265 = vdwg.mxu0
    %v1266 = vmax.f32 %v453, 0.0
    %v1267 = vmax.f32 %v631, 0.0
    %v1268 = vmax.f32 %v455, 0.0
    %v1269 = vmax.f32 %v633, 0.0
    %v1270 = vmax.f32 %v458, 0.0
    %v1271 = vmax.f32 %v636, 0.0
    %v1272 = vmax.f32 %v460, 0.0
    %v1273 = vmax.f32 %v638, 0.0
    %v1274 = vmax.f32 %v463, 0.0
    %v1275 = vmax.f32 %v641, 0.0
    %v1276 = vmax.f32 %v465, 0.0
    %v1277 = vmax.f32 %v643, 0.0
    %v1278 = vmax.f32 %v468, 0.0
    %v1279 = vmax.f32 %v646, 0.0
    %v1280 = vmax.f32 %v470, 0.0
    %v1281 = vmax.f32 %v648, 0.0
    %v1282 = vmax.f32 %v473, 0.0
    %v1283 = vmax.f32 %v651, 0.0
    %v1284 = vmax.f32 %v475, 0.0
    %v1285 = vmax.f32 %v653, 0.0
    %v1286 = vmax.f32 %v478, 0.0
    %v1287 = vmax.f32 %v656, 0.0
    %v1288 = vmax.f32 %v480, 0.0
    %v1289 = vmax.f32 %v658, 0.0
    %v1290 = vmax.f32 %v483, 0.0
    %v1291 = vmax.f32 %v661, 0.0
    %v1292 = vmax.f32 %v485, 0.0
    %v1293 = vmax.f32 %v663, 0.0
    %v1294 = vmax.f32 %v488, 0.0
    %v1295 = vmax.f32 %v666, 0.0
    %v1296 = vmax.f32 %v490, 0.0
    %v1297 = vmax.f32 %v668, 0.0
    %v1298 = vmax.f32 %v493, 0.0
    %v1299 = vmax.f32 %v671, 0.0
    %v1300 = vmax.f32 %v495, 0.0
    %v1301 = vmax.f32 %v673, 0.0
    %v1302 = vmax.f32 %v498, 0.0
    %v1303 = vmax.f32 %v676, 0.0
    %v1304 = vmax.f32 %v500, 0.0
    %v1305 = vmax.f32 %v678, 0.0
    %v1306 = vmax.f32 %v503, 0.0
    %v1307 = vmax.f32 %v681, 0.0
    %v1308 = vmax.f32 %v505, 0.0
    %v1309 = vmax.f32 %v683, 0.0
    %v1310 = vmax.f32 %v508, 0.0
    %v1311 = vmax.f32 %v686, 0.0
    %v1312 = vmax.f32 %v510, 0.0
    %v1313 = vmax.f32 %v688, 0.0
    %v1314 = vmax.f32 %v513, 0.0
    %v1315 = vmax.f32 %v691, 0.0
    %v1316 = vmax.f32 %v515, 0.0
    %v1317 = vmax.f32 %v693, 0.0
    %v1318 = vmax.f32 %v518, 0.0
    %v1319 = vmax.f32 %v696, 0.0
    %v1320 = vmax.f32 %v520, 0.0
    %v1321 = vmax.f32 %v698, 0.0
    %v1322 = vmax.f32 %v523, 0.0
    %v1323 = vmax.f32 %v701, 0.0
    %v1324 = vmax.f32 %v525, 0.0
    %v1325 = vmax.f32 %v703, 0.0
    %v1326 = vmax.f32 %v528, 0.0
    %v1327 = vmax.f32 %v706, 0.0
    %v1328 = vmax.f32 %v530, 0.0
    %v1329 = vmax.f32 %v708, 0.0
    %v1330 = vsub.f32 0.0, %v1009
    %v1331 = vsub.f32 0.0, %v1187
    %v1332 = vsub.f32 0.0, %v1011
    %v1333 = vsub.f32 0.0, %v1189
    %v1334 = vsub.f32 0.0, %v1014
    %v1335 = vsub.f32 0.0, %v1192
    %v1336 = vsub.f32 0.0, %v1016
    %v1337 = vsub.f32 0.0, %v1194
    %v1338 = vsub.f32 0.0, %v1019
    %v1339 = vsub.f32 0.0, %v1197
    %v1340 = vsub.f32 0.0, %v1021
    %v1341 = vsub.f32 0.0, %v1199
    %v1342 = vsub.f32 0.0, %v1024
    %v1343 = vsub.f32 0.0, %v1202
    %v1344 = vsub.f32 0.0, %v1026
    %v1345 = vsub.f32 0.0, %v1204
    %v1346 = vsub.f32 0.0, %v1029
    %v1347 = vsub.f32 0.0, %v1207
    %v1348 = vsub.f32 0.0, %v1031
    %v1349 = vsub.f32 0.0, %v1209
    %v1350 = vsub.f32 0.0, %v1034
    %v1351 = vsub.f32 0.0, %v1212
    %v1352 = vsub.f32 0.0, %v1036
    %v1353 = vsub.f32 0.0, %v1214
    %v1354 = vsub.f32 0.0, %v1039
    %v1355 = vsub.f32 0.0, %v1217
    %v1356 = vsub.f32 0.0, %v1041
    %v1357 = vsub.f32 0.0, %v1219
    %v1358 = vsub.f32 0.0, %v1044
    %v1359 = vsub.f32 0.0, %v1222
    %v1360 = vsub.f32 0.0, %v1046
    %v1361 = vsub.f32 0.0, %v1224
    %v1362 = vsub.f32 0.0, %v1049
    %v1363 = vsub.f32 0.0, %v1227
    %v1364 = vsub.f32 0.0, %v1051
    %v1365 = vsub.f32 0.0, %v1229
    %v1366 = vsub.f32 0.0, %v1054
    %v1367 = vsub.f32 0.0, %v1232
    %v1368 = vsub.f32 0.0, %v1056
    %v1369 = vsub.f32 0.0, %v1234
    %v1370 = vsub.f32 0.0, %v1059
    %v1371 = vsub.f32 0.0, %v1237
    %v1372 = vsub.f32 0.0, %v1061
    %v1373 = vsub.f32 0.0, %v1239
    %v1374 = vsub.f32 0.0, %v1064
    %v1375 = vsub.f32 0.0, %v1242
    %v1376 = vsub.f32 0.0, %v1066
    %v1377 = vsub.f32 0.0, %v1244
    %v1378 = vsub.f32 0.0, %v1069
    %v1379 = vsub.f32 0.0, %v1247
    %v1380 = vsub.f32 0.0, %v1071
    %v1381 = vsub.f32 0.0, %v1249
    %v1382 = vsub.f32 0.0, %v1074
    %v1383 = vsub.f32 0.0, %v1252
    %v1384 = vsub.f32 0.0, %v1076
    %v1385 = vsub.f32 0.0, %v1254
    %v1386 = vsub.f32 0.0, %v1079
    %v1387 = vsub.f32 0.0, %v1257
    %v1388 = vsub.f32 0.0, %v1081
    %v1389 = vsub.f32 0.0, %v1259
    %v1390 = vsub.f32 0.0, %v1084
    %v1391 = vsub.f32 0.0, %v1262
    %v1392 = vsub.f32 0.0, %v1086
    %v1393 = vsub.f32 0.0, %v1264
    %v1394 = vmul.f32 %v1330, 1.442695
    %v1395 = vpow.pop %v1394
    %v1396 = vmul.f32 %v1331, 1.442695
    %v1397 = vpow.pop %v1396
    %v1398 = vmul.f32 %v1332, 1.442695
    %v1399 = vpow.pop %v1398
    %v1400 = vmul.f32 %v1333, 1.442695
    %v1401 = vpow.pop %v1400
    %v1402 = vmul.f32 %v1334, 1.442695
    %v1403 = vpow.pop %v1402
    %v1404 = vmul.f32 %v1335, 1.442695
    %v1405 = vpow.pop %v1404
    %v1406 = vmul.f32 %v1336, 1.442695
    %v1407 = vpow.pop %v1406
    %v1408 = vmul.f32 %v1337, 1.442695
    %v1409 = vpow.pop %v1408
    %v1410 = vmul.f32 %v1338, 1.442695
    %v1411 = vpow.pop %v1410
    %v1412 = vmul.f32 %v1339, 1.442695
    %v1413 = vpow.pop %v1412
    %v1414 = vmul.f32 %v1340, 1.442695
    %v1415 = vpow.pop %v1414
    %v1416 = vmul.f32 %v1341, 1.442695
    %v1417 = vpow.pop %v1416
    %v1418 = vmul.f32 %v1342, 1.442695
    %v1419 = vpow.pop %v1418
    %v1420 = vmul.f32 %v1343, 1.442695
    %v1421 = vpow.pop %v1420
    %v1422 = vmul.f32 %v1344, 1.442695
    %v1423 = vpow.pop %v1422
    %v1424 = vmul.f32 %v1345, 1.442695
    %v1425 = vpow.pop %v1424
    %v1426 = vmul.f32 %v1346, 1.442695
    %v1427 = vpow.pop %v1426
    %v1428 = vmul.f32 %v1347, 1.442695
    %v1429 = vpow.pop %v1428
    %v1430 = vmul.f32 %v1348, 1.442695
    %v1431 = vpow.pop %v1430
    %v1432 = vmul.f32 %v1349, 1.442695
    %v1433 = vpow.pop %v1432
    %v1434 = vmul.f32 %v1350, 1.442695
    %v1435 = vpow.pop %v1434
    %v1436 = vmul.f32 %v1351, 1.442695
    %v1437 = vpow.pop %v1436
    %v1438 = vmul.f32 %v1352, 1.442695
    %v1439 = vpow.pop %v1438
    %v1440 = vmul.f32 %v1353, 1.442695
    %v1441 = vpow.pop %v1440
    %v1442 = vmul.f32 %v1354, 1.442695
    %v1443 = vpow.pop %v1442
    %v1444 = vmul.f32 %v1355, 1.442695
    %v1445 = vpow.pop %v1444
    %v1446 = vmul.f32 %v1356, 1.442695
    %v1447 = vpow.pop %v1446
    %v1448 = vmul.f32 %v1357, 1.442695
    %v1449 = vpow.pop %v1448
    %v1450 = vmul.f32 %v1358, 1.442695
    %v1451 = vpow.pop %v1450
    %v1452 = vmul.f32 %v1359, 1.442695
    %v1453 = vpow.pop %v1452
    %v1454 = vmul.f32 %v1360, 1.442695
    %v1455 = vpow.pop %v1454
    %v1456 = vmul.f32 %v1361, 1.442695
    %v1457 = vpow.pop %v1456
    %v1458 = vmul.f32 %v1362, 1.442695
    %v1459 = vpow.pop %v1458
    %v1460 = vmul.f32 %v1363, 1.442695
    %v1461 = vpow.pop %v1460
    %v1462 = vmul.f32 %v1364, 1.442695
    %v1463 = vpow.pop %v1462
    %v1464 = vmul.f32 %v1365, 1.442695
    %v1465 = vpow.pop %v1464
    %v1466 = vmul.f32 %v1366, 1.442695
    %v1467 = vpow.pop %v1466
    %v1468 = vmul.f32 %v1367, 1.442695
    %v1469 = vpow.pop %v1468
    %v1470 = vmul.f32 %v1368, 1.442695
    %v1471 = vpow.pop %v1470
    %v1472 = vmul.f32 %v1369, 1.442695
    %v1473 = vpow.pop %v1472
    %v1474 = vmul.f32 %v1370, 1.442695
    %v1475 = vpow.pop %v1474
    %v1476 = vmul.f32 %v1371, 1.442695
    %v1477 = vpow.pop %v1476
    %v1478 = vmul.f32 %v1372, 1.442695
    %v1479 = vpow.pop %v1478
    %v1480 = vmul.f32 %v1373, 1.442695
    %v1481 = vpow.pop %v1480
    %v1482 = vmul.f32 %v1374, 1.442695
    %v1483 = vpow.pop %v1482
    %v1484 = vmul.f32 %v1375, 1.442695
    %v1485 = vpow.pop %v1484
    %v1486 = vmul.f32 %v1376, 1.442695
    %v1487 = vpow.pop %v1486
    %v1488 = vmul.f32 %v1377, 1.442695
    %v1489 = vpow.pop %v1488
    %v1490 = vmul.f32 %v1378, 1.442695
    %v1491 = vpow.pop %v1490
    %v1492 = vmul.f32 %v1379, 1.442695
    %v1493 = vpow.pop %v1492
    %v1494 = vmul.f32 %v1380, 1.442695
    %v1495 = vpow.pop %v1494
    %v1496 = vmul.f32 %v1381, 1.442695
    %v1497 = vpow.pop %v1496
    %v1498 = vmul.f32 %v1382, 1.442695
    %v1499 = vpow.pop %v1498
    %v1500 = vmul.f32 %v1383, 1.442695
    %v1501 = vpow.pop %v1500
    %v1502 = vmul.f32 %v1384, 1.442695
    %v1503 = vpow.pop %v1502
    %v1504 = vmul.f32 %v1385, 1.442695
    %v1505 = vpow.pop %v1504
    %v1506 = vmul.f32 %v1386, 1.442695
    %v1507 = vpow.pop %v1506
    %v1508 = vmul.f32 %v1387, 1.442695
    %v1509 = vpow.pop %v1508
    %v1510 = vmul.f32 %v1388, 1.442695
    %v1511 = vpow.pop %v1510
    %v1512 = vmul.f32 %v1389, 1.442695
    %v1513 = vpow.pop %v1512
    %v1514 = vmul.f32 %v1390, 1.442695
    %v1515 = vpow.pop %v1514
    %v1516 = vmul.f32 %v1391, 1.442695
    %v1517 = vpow.pop %v1516
    %v1518 = vmul.f32 %v1392, 1.442695
    %v1519 = vpow.pop %v1518
    %v1520 = vmul.f32 %v1393, 1.442695
    %v1521 = vpow.pop %v1520
    %v1522 = vadd.f32 %v1395, 1.0
    %v1523 = vadd.f32 %v1397, 1.0
    %v1524 = vadd.f32 %v1399, 1.0
    %v1525 = vadd.f32 %v1401, 1.0
    %v1526 = vadd.f32 %v1403, 1.0
    %v1527 = vadd.f32 %v1405, 1.0
    %v1528 = vadd.f32 %v1407, 1.0
    %v1529 = vadd.f32 %v1409, 1.0
    %v1530 = vadd.f32 %v1411, 1.0
    %v1531 = vadd.f32 %v1413, 1.0
    %v1532 = vadd.f32 %v1415, 1.0
    %v1533 = vadd.f32 %v1417, 1.0
    %v1534 = vadd.f32 %v1419, 1.0
    %v1535 = vadd.f32 %v1421, 1.0
    %v1536 = vadd.f32 %v1423, 1.0
    %v1537 = vadd.f32 %v1425, 1.0
    %v1538 = vadd.f32 %v1427, 1.0
    %v1539 = vadd.f32 %v1429, 1.0
    %v1540 = vadd.f32 %v1431, 1.0
    %v1541 = vadd.f32 %v1433, 1.0
    %v1542 = vadd.f32 %v1435, 1.0
    %v1543 = vadd.f32 %v1437, 1.0
    %v1544 = vadd.f32 %v1439, 1.0
    %v1545 = vadd.f32 %v1441, 1.0
    %v1546 = vadd.f32 %v1443, 1.0
    %v1547 = vadd.f32 %v1445, 1.0
    %v1548 = vadd.f32 %v1447, 1.0
    %v1549 = vadd.f32 %v1449, 1.0
    %v1550 = vadd.f32 %v1451, 1.0
    %v1551 = vadd.f32 %v1453, 1.0
    %v1552 = vadd.f32 %v1455, 1.0
    %v1553 = vadd.f32 %v1457, 1.0
    %v1554 = vadd.f32 %v1459, 1.0
    %v1555 = vadd.f32 %v1461, 1.0
    %v1556 = vadd.f32 %v1463, 1.0
    %v1557 = vadd.f32 %v1465, 1.0
    %v1558 = vadd.f32 %v1467, 1.0
    %v1559 = vadd.f32 %v1469, 1.0
    %v1560 = vadd.f32 %v1471, 1.0
    %v1561 = vadd.f32 %v1473, 1.0
    %v1562 = vadd.f32 %v1475, 1.0
    %v1563 = vadd.f32 %v1477, 1.0
    %v1564 = vadd.f32 %v1479, 1.0
    %v1565 = vadd.f32 %v1481, 1.0
    %v1566 = vadd.f32 %v1483, 1.0
    %v1567 = vadd.f32 %v1485, 1.0
    %v1568 = vadd.f32 %v1487, 1.0
    %v1569 = vadd.f32 %v1489, 1.0
    %v1570 = vadd.f32 %v1491, 1.0
    %v1571 = vadd.f32 %v1493, 1.0
    %v1572 = vadd.f32 %v1495, 1.0
    %v1573 = vadd.f32 %v1497, 1.0
    %v1574 = vadd.f32 %v1499, 1.0
    %v1575 = vadd.f32 %v1501, 1.0
    %v1576 = vadd.f32 %v1503, 1.0
    %v1577 = vadd.f32 %v1505, 1.0
    %v1578 = vadd.f32 %v1507, 1.0
    %v1579 = vadd.f32 %v1509, 1.0
    %v1580 = vadd.f32 %v1511, 1.0
    %v1581 = vadd.f32 %v1513, 1.0
    %v1582 = vadd.f32 %v1515, 1.0
    %v1583 = vadd.f32 %v1517, 1.0
    %v1584 = vadd.f32 %v1519, 1.0
    %v1585 = vadd.f32 %v1521, 1.0
    %v1586 = vrcp.pop %v1522
    %v1587 = vrcp.pop %v1523
    %v1588 = vrcp.pop %v1524
    %v1589 = vrcp.pop %v1525
    %v1590 = vrcp.pop %v1526
    %v1591 = vrcp.pop %v1527
    %v1592 = vrcp.pop %v1528
    %v1593 = vrcp.pop %v1529
    %v1594 = vrcp.pop %v1530
    %v1595 = vrcp.pop %v1531
    %v1596 = vrcp.pop %v1532
    %v1597 = vrcp.pop %v1533
    %v1598 = vrcp.pop %v1534
    %v1599 = vrcp.pop %v1535
    %v1600 = vrcp.pop %v1536
    %v1601 = vrcp.pop %v1537
    %v1602 = vrcp.pop %v1538
    %v1603 = vrcp.pop %v1539
    %v1604 = vrcp.pop %v1540
    %v1605 = vrcp.pop %v1541
    %v1606 = vrcp.pop %v1542
    %v1607 = vrcp.pop %v1543
    %v1608 = vrcp.pop %v1544
    %v1609 = vrcp.pop %v1545
    %v1610 = vrcp.pop %v1546
    %v1611 = vrcp.pop %v1547
    %v1612 = vrcp.pop %v1548
    %v1613 = vrcp.pop %v1549
    %v1614 = vrcp.pop %v1550
    %v1615 = vrcp.pop %v1551
    %v1616 = vrcp.pop %v1552
    %v1617 = vrcp.pop %v1553
    %v1618 = vrcp.pop %v1554
    %v1619 = vrcp.pop %v1555
    %v1620 = vrcp.pop %v1556
    %v1621 = vrcp.pop %v1557
    %v1622 = vrcp.pop %v1558
    %v1623 = vrcp.pop %v1559
    %v1624 = vrcp.pop %v1560
    %v1625 = vrcp.pop %v1561
    %v1626 = vrcp.pop %v1562
    %v1627 = vrcp.pop %v1563
    %v1628 = vrcp.pop %v1564
    %v1629 = vrcp.pop %v1565
    %v1630 = vrcp.pop %v1566
    %v1631 = vrcp.pop %v1567
    %v1632 = vrcp.pop %v1568
    %v1633 = vrcp.pop %v1569
    %v1634 = vrcp.pop %v1570
    %v1635 = vrcp.pop %v1571
    %v1636 = vrcp.pop %v1572
    %v1637 = vrcp.pop %v1573
    %v1638 = vrcp.pop %v1574
    %v1639 = vrcp.pop %v1575
    %v1640 = vrcp.pop %v1576
    %v1641 = vrcp.pop %v1577
    %v1642 = vrcp.pop %v1578
    %v1643 = vrcp.pop %v1579
    %v1644 = vrcp.pop %v1580
    %v1645 = vrcp.pop %v1581
    %v1646 = vrcp.pop %v1582
    %v1647 = vrcp.pop %v1583
    %v1648 = vrcp.pop %v1584
    %v1649 = vrcp.pop %v1585
    %v1650 = vsub.f32 %v1266, %v60
    %v1651 = vsub.f32 %v1267, %v61
    %v1652 = vsub.f32 %v1268, %v62
    %v1653 = vsub.f32 %v1269, %v63
    %v1654 = vsub.f32 %v1270, %v64
    %v1655 = vsub.f32 %v1271, %v65
    %v1656 = vsub.f32 %v1272, %v66
    %v1657 = vsub.f32 %v1273, %v67
    %v1658 = vsub.f32 %v1274, %v68
    %v1659 = vsub.f32 %v1275, %v69
    %v1660 = vsub.f32 %v1276, %v70
    %v1661 = vsub.f32 %v1277, %v71
    %v1662 = vsub.f32 %v1278, %v72
    %v1663 = vsub.f32 %v1279, %v73
    %v1664 = vsub.f32 %v1280, %v74
    %v1665 = vsub.f32 %v1281, %v75
    %v1666 = vsub.f32 %v1282, %v76
    %v1667 = vsub.f32 %v1283, %v77
    %v1668 = vsub.f32 %v1284, %v78
    %v1669 = vsub.f32 %v1285, %v79
    %v1670 = vsub.f32 %v1286, %v80
    %v1671 = vsub.f32 %v1287, %v81
    %v1672 = vsub.f32 %v1288, %v82
    %v1673 = vsub.f32 %v1289, %v83
    %v1674 = vsub.f32 %v1290, %v84
    %v1675 = vsub.f32 %v1291, %v85
    %v1676 = vsub.f32 %v1292, %v86
    %v1677 = vsub.f32 %v1293, %v87
    %v1678 = vsub.f32 %v1294, %v88
    %v1679 = vsub.f32 %v1295, %v89
    %v1680 = vsub.f32 %v1296, %v90
    %v1681 = vsub.f32 %v1297, %v91
    %v1682 = vsub.f32 %v1298, %v92
    %v1683 = vsub.f32 %v1299, %v93
    %v1684 = vsub.f32 %v1300, %v94
    %v1685 = vsub.f32 %v1301, %v95
    %v1686 = vsub.f32 %v1302, %v96
    %v1687 = vsub.f32 %v1303, %v97
    %v1688 = vsub.f32 %v1304, %v98
    %v1689 = vsub.f32 %v1305, %v99
    %v1690 = vsub.f32 %v1306, %v100
    %v1691 = vsub.f32 %v1307, %v101
    %v1692 = vsub.f32 %v1308, %v102
    %v1693 = vsub.f32 %v1309, %v103
    %v1694 = vsub.f32 %v1310, %v104
    %v1695 = vsub.f32 %v1311, %v105
    %v1696 = vsub.f32 %v1312, %v106
    %v1697 = vsub.f32 %v1313, %v107
    %v1698 = vsub.f32 %v1314, %v108
    %v1699 = vsub.f32 %v1315, %v109
    %v1700 = vsub.f32 %v1316, %v110
    %v1701 = vsub.f32 %v1317, %v111
    %v1702 = vsub.f32 %v1318, %v112
    %v1703 = vsub.f32 %v1319, %v113
    %v1704 = vsub.f32 %v1320, %v114
    %v1705 = vsub.f32 %v1321, %v115
    %v1706 = vsub.f32 %v1322, %v116
    %v1707 = vsub.f32 %v1323, %v117
    %v1708 = vsub.f32 %v1324, %v118
    %v1709 = vsub.f32 %v1325, %v119
    %v1710 = vsub.f32 %v1326, %v120
    %v1711 = vsub.f32 %v1327, %v121
    %v1712 = vsub.f32 %v1328, %v122
    %v1713 = vsub.f32 %v1329, %v123
    %v1714 = vmul.f32 %v1586, %v1650
    %v1715 = vmul.f32 %v1587, %v1651
    %v1716 = vmul.f32 %v1588, %v1652
    %v1717 = vmul.f32 %v1589, %v1653
    %v1718 = vmul.f32 %v1590, %v1654
    %v1719 = vmul.f32 %v1591, %v1655
    %v1720 = vmul.f32 %v1592, %v1656
    %v1721 = vmul.f32 %v1593, %v1657
    %v1722 = vmul.f32 %v1594, %v1658
    %v1723 = vmul.f32 %v1595, %v1659
    %v1724 = vmul.f32 %v1596, %v1660
    %v1725 = vmul.f32 %v1597, %v1661
    %v1726 = vmul.f32 %v1598, %v1662
    %v1727 = vmul.f32 %v1599, %v1663
    %v1728 = vmul.f32 %v1600, %v1664
    %v1729 = vmul.f32 %v1601, %v1665
    %v1730 = vmul.f32 %v1602, %v1666
    %v1731 = vmul.f32 %v1603, %v1667
    %v1732 = vmul.f32 %v1604, %v1668
    %v1733 = vmul.f32 %v1605, %v1669
    %v1734 = vmul.f32 %v1606, %v1670
    %v1735 = vmul.f32 %v1607, %v1671
    %v1736 = vmul.f32 %v1608, %v1672
    %v1737 = vmul.f32 %v1609, %v1673
    %v1738 = vmul.f32 %v1610, %v1674
    %v1739 = vmul.f32 %v1611, %v1675
    %v1740 = vmul.f32 %v1612, %v1676
    %v1741 = vmul.f32 %v1613, %v1677
    %v1742 = vmul.f32 %v1614, %v1678
    %v1743 = vmul.f32 %v1615, %v1679
    %v1744 = vmul.f32 %v1616, %v1680
    %v1745 = vmul.f32 %v1617, %v1681
    %v1746 = vmul.f32 %v1618, %v1682
    %v1747 = vmul.f32 %v1619, %v1683
    %v1748 = vmul.f32 %v1620, %v1684
    %v1749 = vmul.f32 %v1621, %v1685
    %v1750 = vmul.f32 %v1622, %v1686
    %v1751 = vmul.f32 %v1623, %v1687
    %v1752 = vmul.f32 %v1624, %v1688
    %v1753 = vmul.f32 %v1625, %v1689
    %v1754 = vmul.f32 %v1626, %v1690
    %v1755 = vmul.f32 %v1627, %v1691
    %v1756 = vmul.f32 %v1628, %v1692
    %v1757 = vmul.f32 %v1629, %v1693
    %v1758 = vmul.f32 %v1630, %v1694
    %v1759 = vmul.f32 %v1631, %v1695
    %v1760 = vmul.f32 %v1632, %v1696
    %v1761 = vmul.f32 %v1633, %v1697
    %v1762 = vmul.f32 %v1634, %v1698
    %v1763 = vmul.f32 %v1635, %v1699
    %v1764 = vmul.f32 %v1636, %v1700
    %v1765 = vmul.f32 %v1637, %v1701
    %v1766 = vmul.f32 %v1638, %v1702
    %v1767 = vmul.f32 %v1639, %v1703
    %v1768 = vmul.f32 %v1640, %v1704
    %v1769 = vmul.f32 %v1641, %v1705
    %v1770 = vmul.f32 %v1642, %v1706
    %v1771 = vmul.f32 %v1643, %v1707
    %v1772 = vmul.f32 %v1644, %v1708
    %v1773 = vmul.f32 %v1645, %v1709
    %v1774 = vmul.f32 %v1646, %v1710
    %v1775 = vmul.f32 %v1647, %v1711
    %v1776 = vmul.f32 %v1648, %v1712
    %v1777 = vmul.f32 %v1649, %v1713
    %v1778 = vadd.f32 %v60, %v1714
    %v1779 = vadd.f32 %v61, %v1715
    %v1780 = vadd.f32 %v62, %v1716
    %v1781 = vadd.f32 %v63, %v1717
    %v1782 = vadd.f32 %v64, %v1718
    %v1783 = vadd.f32 %v65, %v1719
    %v1784 = vadd.f32 %v66, %v1720
    %v1785 = vadd.f32 %v67, %v1721
    %v1786 = vadd.f32 %v68, %v1722
    %v1787 = vadd.f32 %v69, %v1723
    %v1788 = vadd.f32 %v70, %v1724
    %v1789 = vadd.f32 %v71, %v1725
    %v1790 = vadd.f32 %v72, %v1726
    %v1791 = vadd.f32 %v73, %v1727
    %v1792 = vadd.f32 %v74, %v1728
    %v1793 = vadd.f32 %v75, %v1729
    %v1794 = vadd.f32 %v76, %v1730
    %v1795 = vadd.f32 %v77, %v1731
    %v1796 = vadd.f32 %v78, %v1732
    %v1797 = vadd.f32 %v79, %v1733
    %v1798 = vadd.f32 %v80, %v1734
    %v1799 = vadd.f32 %v81, %v1735
    %v1800 = vadd.f32 %v82, %v1736
    %v1801 = vadd.f32 %v83, %v1737
    %v1802 = vadd.f32 %v84, %v1738
    %v1803 = vadd.f32 %v85, %v1739
    %v1804 = vadd.f32 %v86, %v1740
    %v1805 = vadd.f32 %v87, %v1741
    %v1806 = vadd.f32 %v88, %v1742
    %v1807 = vadd.f32 %v89, %v1743
    %v1808 = vadd.f32 %v90, %v1744
    %v1809 = vadd.f32 %v91, %v1745
    %v1810 = vadd.f32 %v92, %v1746
    %v1811 = vadd.f32 %v93, %v1747
    %v1812 = vadd.f32 %v94, %v1748
    %v1813 = vadd.f32 %v95, %v1749
    %v1814 = vadd.f32 %v96, %v1750
    %v1815 = vadd.f32 %v97, %v1751
    %v1816 = vadd.f32 %v98, %v1752
    %v1817 = vadd.f32 %v99, %v1753
    %v1818 = vadd.f32 %v100, %v1754
    %v1819 = vadd.f32 %v101, %v1755
    %v1820 = vadd.f32 %v102, %v1756
    %v1821 = vadd.f32 %v103, %v1757
    %v1822 = vadd.f32 %v104, %v1758
    %v1823 = vadd.f32 %v105, %v1759
    %v1824 = vadd.f32 %v106, %v1760
    %v1825 = vadd.f32 %v107, %v1761
    %v1826 = vadd.f32 %v108, %v1762
    %v1827 = vadd.f32 %v109, %v1763
    %v1828 = vadd.f32 %v110, %v1764
    %v1829 = vadd.f32 %v111, %v1765
    %v1830 = vadd.f32 %v112, %v1766
    %v1831 = vadd.f32 %v113, %v1767
    %v1832 = vadd.f32 %v114, %v1768
    %v1833 = vadd.f32 %v115, %v1769
    %v1834 = vadd.f32 %v116, %v1770
    %v1835 = vadd.f32 %v117, %v1771
    %v1836 = vadd.f32 %v118, %v1772
    %v1837 = vadd.f32 %v119, %v1773
    %v1838 = vadd.f32 %v120, %v1774
    %v1839 = vadd.f32 %v121, %v1775
    %v1840 = vadd.f32 %v122, %v1776
    %v1841 = vadd.f32 %v123, %v1777
    %1842 = vst [vmem:[#allocation8] sm:$0xff] %v1778
    %1843 = vst [vmem:[#allocation8 + $0x8] sm:$0xff] %v1779
    %1844 = vst [vmem:[#allocation8 + $0x10] sm:$0xff] %v1780
    %1845 = vst [vmem:[#allocation8 + $0x18] sm:$0xff] %v1781
    %1846 = vst [vmem:[#allocation8 + $0x20] sm:$0xff] %v1782
    %1847 = vst [vmem:[#allocation8 + $0x28] sm:$0xff] %v1783
    %1848 = vst [vmem:[#allocation8 + $0x30] sm:$0xff] %v1784
    %1849 = vst [vmem:[#allocation8 + $0x38] sm:$0xff] %v1785
    %1850 = vst [vmem:[#allocation8 + $0x40] sm:$0xff] %v1786
    %1851 = vst [vmem:[#allocation8 + $0x48] sm:$0xff] %v1787
    %1852 = vst [vmem:[#allocation8 + $0x50] sm:$0xff] %v1788
    %1853 = vst [vmem:[#allocation8 + $0x58] sm:$0xff] %v1789
    %1854 = vst [vmem:[#allocation8 + $0x60] sm:$0xff] %v1790
    %1855 = vst [vmem:[#allocation8 + $0x68] sm:$0xff] %v1791
    %1856 = vst [vmem:[#allocation8 + $0x70] sm:$0xff] %v1792
    %1857 = vst [vmem:[#allocation8 + $0x78] sm:$0xff] %v1793
    %1858 = vst [vmem:[#allocation8 + $0x80] sm:$0xff] %v1794
    %1859 = vst [vmem:[#allocation8 + $0x88] sm:$0xff] %v1795
    %1860 = vst [vmem:[#allocation8 + $0x90] sm:$0xff] %v1796
    %1861 = vst [vmem:[#allocation8 + $0x98] sm:$0xff] %v1797
    %1862 = vst [vmem:[#allocation8 + $0xa0] sm:$0xff] %v1798
    %1863 = vst [vmem:[#allocation8 + $0xa8] sm:$0xff] %v1799
    %1864 = vst [vmem:[#allocation8 + $0xb0] sm:$0xff] %v1800
    %1865 = vst [vmem:[#allocation8 + $0xb8] sm:$0xff] %v1801
    %1866 = vst [vmem:[#allocation8 + $0xc0] sm:$0xff] %v1802
    %1867 = vst [vmem:[#allocation8 + $0xc8] sm:$0xff] %v1803
    %1868 = vst [vmem:[#allocation8 + $0xd0] sm:$0xff] %v1804
    %1869 = vst [vmem:[#allocation8 + $0xd8] sm:$0xff] %v1805
    %1870 = vst [vmem:[#allocation8 + $0xe0] sm:$0xff] %v1806
    %1871 = vst [vmem:[#allocation8 + $0xe8] sm:$0xff] %v1807
    %1872 = vst [vmem:[#allocation8 + $0xf0] sm:$0xff] %v1808
    %1873 = vst [vmem:[#allocation8 + $0xf8] sm:$0xff] %v1809
    %1874 = vst [vmem:[#allocation8 + $0x100] sm:$0xff] %v1810
    %1875 = vst [vmem:[#allocation8 + $0x108] sm:$0xff] %v1811
    %1876 = vst [vmem:[#allocation8 + $0x110] sm:$0xff] %v1812
    %1877 = vst [vmem:[#allocation8 + $0x118] sm:$0xff] %v1813
    %1878 = vst [vmem:[#allocation8 + $0x120] sm:$0xff] %v1814
    %1879 = vst [vmem:[#allocation8 + $0x128] sm:$0xff] %v1815
    %1880 = vst [vmem:[#allocation8 + $0x130] sm:$0xff] %v1816
    %1881 = vst [vmem:[#allocation8 + $0x138] sm:$0xff] %v1817
    %1882 = vst [vmem:[#allocation8 + $0x140] sm:$0xff] %v1818
    %1883 = vst [vmem:[#allocation8 + $0x148] sm:$0xff] %v1819
    %1884 = vst [vmem:[#allocation8 + $0x150] sm:$0xff] %v1820
    %1885 = vst [vmem:[#allocation8 + $0x158] sm:$0xff] %v1821
    %1886 = vst [vmem:[#allocation8 + $0x160] sm:$0xff] %v1822
    %1887 = vst [vmem:[#allocation8 + $0x168] sm:$0xff] %v1823
    %1888 = vst [vmem:[#allocation8 + $0x170] sm:$0xff] %v1824
    %1889 = vst [vmem:[#allocation8 + $0x178] sm:$0xff] %v1825
    %1890 = vst [vmem:[#allocation8 + $0x180] sm:$0xff] %v1826
    %1891 = vst [vmem:[#allocation8 + $0x188] sm:$0xff] %v1827
    %1892 = vst [vmem:[#allocation8 + $0x190] sm:$0xff] %v1828
    %1893 = vst [vmem:[#allocation8 + $0x198] sm:$0xff] %v1829
    %1894 = vst [vmem:[#allocation8 + $0x1a0] sm:$0xff] %v1830
    %1895 = vst [vmem:[#allocation8 + $0x1a8] sm:$0xff] %v1831
    %1896 = vst [vmem:[#allocation8 + $0x1b0] sm:$0xff] %v1832
    %1897 = vst [vmem:[#allocation8 + $0x1b8] sm:$0xff] %v1833
    %1898 = vst [vmem:[#allocation8 + $0x1c0] sm:$0xff] %v1834
    %1899 = vst [vmem:[#allocation8 + $0x1c8] sm:$0xff] %v1835
    %1900 = vst [vmem:[#allocation8 + $0x1d0] sm:$0xff] %v1836
    %1901 = vst [vmem:[#allocation8 + $0x1d8] sm:$0xff] %v1837
    %1902 = vst [vmem:[#allocation8 + $0x1e0] sm:$0xff] %v1838
    %1903 = vst [vmem:[#allocation8 + $0x1e8] sm:$0xff] %v1839
    %1904 = vst [vmem:[#allocation8 + $0x1f0] sm:$0xff] %v1840
    %1905 = vst [vmem:[#allocation8 + $0x1f8] sm:$0xff] %v1841
    // Predicated region
    $region26: #{tpu_custom_call.1} parent=1 // pred_check
      _
    $region27: #{tpu_custom_call.1} parent=1 // pred_check_branch
      %1907 = sbr.rel (0) target = $region29
    $region28: #{tpu_custom_call.1} parent=1 // pred_region
      %1909 = vsyncadd [#allocation4], 0
      %s1910 = sshll.u32 [#allocation8], 4
      %s1911 = int_to_ptr.vmem [resolvable:$true] %s1910
      %s1912 = sshll.u32 %s3, 4
      %s1913 = int_to_ptr.hbm [resolvable:$true] %s1912
      %1918 = dma.vmem_to_hbm [thread:$0]  %s1911, 8192, %s1913, [#allocation4], 256, 256, 16
    $region29: #{tpu_custom_call.1} parent=1 // pred_fallthru
      _
    // Predicated region
    $region30: #{tpu_custom_call.1} parent=1 // pred_check
      _
    $region31: #{tpu_custom_call.1} parent=1 // pred_check_branch
      %1920 = sbr.rel (0) target = $region33
    $region32: #{tpu_custom_call.1} parent=1 // pred_region
      %1922 = dma.done [#allocation4], 8192
    $region33: #{tpu_custom_call.1} parent=1 // pred_fallthru
      _
    %1923 = vsyncpa [#allocation3], 1
    %1924 = vsyncpa [#allocation6], 1
    %1925 = vsyncpa [#allocation4], 1

</llo_original>
